<compile_context>
chip_gen: v6e
topology: v6e:2x2x1
jax: 0.10.0
libtpu: 0.0.40
codegen_flags: <defaults>
</compile_context>

<pallas_src>
import functools

import jax
import jax.numpy as jnp
from jax.experimental import pallas as pl
from jax.experimental.pallas import tpu as pltpu


def _round_up(x, m):
    return (x + m - 1) // m * m


# --------------------------- fused QKV projection (1x1 convs) ---------------------------

def _qkv_proj_kernel(x_ref, w_ref, b_ref, q_ref, k_ref, v_ref):
    # x_ref: (1, C, tn) f32 ; w_ref: (Cout, C) bf16 ; b_ref: (Cout, 1) f32
    x = x_ref[0].astype(jnp.bfloat16)                                   # (C, tn)
    acc = jnp.dot(w_ref[...], x, preferred_element_type=jnp.float32)    # (Cout, tn)
    acc = acc + b_ref[...]
    c8 = q_ref.shape[1]
    q_ref[0] = acc[:c8].astype(q_ref.dtype)
    k_ref[0] = acc[c8:2 * c8].astype(k_ref.dtype)
    v_ref[0] = acc[2 * c8:].astype(v_ref.dtype)


def qkv_projection(x_chw, w_qkv, b_qkv, c8, *, tn):
    """x_chw: (B, C, HWp) f32; w_qkv: (Cout, C) bf16; b_qkv: (Cout, 1) f32.
    Returns bf16 q (B,C8,HWp), k (B,C8,HWp), v (B,C,HWp) in HW-on-lanes layout."""
    B, C, HWp = x_chw.shape
    Cout = w_qkv.shape[0]
    return pl.pallas_call(
        _qkv_proj_kernel,
        grid=(B, HWp // tn),
        in_specs=[
            pl.BlockSpec((1, C, tn), lambda b, j: (b, 0, j)),
            pl.BlockSpec((Cout, C), lambda b, j: (0, 0)),
            pl.BlockSpec((Cout, 1), lambda b, j: (0, 0)),
        ],
        out_specs=(
            pl.BlockSpec((1, c8, tn), lambda b, j: (b, 0, j)),
            pl.BlockSpec((1, c8, tn), lambda b, j: (b, 0, j)),
            pl.BlockSpec((1, C, tn), lambda b, j: (b, 0, j)),
        ),
        out_shape=(
            jax.ShapeDtypeStruct((B, c8, HWp), jnp.bfloat16),
            jax.ShapeDtypeStruct((B, c8, HWp), jnp.bfloat16),
            jax.ShapeDtypeStruct((B, C, HWp), jnp.bfloat16),
        ),
        compiler_params=pltpu.CompilerParams(
            dimension_semantics=("parallel", "parallel")),
    )(x_chw, w_qkv, b_qkv)


# --------------------------- fused flash-style attention core ---------------------------

def _attention_kernel(gamma_ref, q_ref, k_ref, v_ref, x_ref, o_ref,
                      m_sc, l_sc, acc_sc, *, hw, hw_pad, tkv):
    kv = pl.program_id(2)

    @pl.when(kv == 0)
    def _():
        m_sc[...] = jnp.full_like(m_sc, -jnp.inf)
        l_sc[...] = jnp.zeros_like(l_sc)
        acc_sc[...] = jnp.zeros_like(acc_sc)

    q = q_ref[0]                                      # (C8, tq)  bf16
    k = k_ref[0]                                      # (C8, tkv) bf16
    v = v_ref[0]                                      # (C, tkv)  bf16

    # s_T[j, i] = sum_c k[c, j] * q[c, i]   -> (tkv, tq); softmax axis = sublane axis 0.
    s = jax.lax.dot_general(k, q, (((0,), (0,)), ((), ())),
                            preferred_element_type=jnp.float32)

    if hw_pad > hw:                                   # static: mask padded kv positions
        j = kv * tkv + jax.lax.broadcasted_iota(jnp.int32, s.shape, 0)
        s = jnp.where(j < hw, s, -jnp.inf)

    m_prev = m_sc[...]                                                   # (1, tq)
    m_new = jnp.maximum(m_prev, jnp.max(s, axis=0, keepdims=True))
    alpha = jnp.exp(m_prev - m_new)                                      # (1, tq)
    # TODO(synk): on v6e/v7x the exp could run in bf16 (2x EUP) -- kept f32 for v5e portability.
    p = jnp.exp(s - m_new)                                               # (tkv, tq)
    l_sc[...] = alpha * l_sc[...] + jnp.sum(p, axis=0, keepdims=True)
    acc_sc[...] = alpha * acc_sc[...] + jnp.dot(
        v, p.astype(v.dtype), preferred_element_type=jnp.float32)        # (C, tq)
    m_sc[...] = m_new

    @pl.when(kv == pl.num_programs(2) - 1)
    def _():
        inv_l = pl.reciprocal(l_sc[...], approx=True)
        attn_out = acc_sc[...] * inv_l                                   # (C, tq)
        o_ref[0] = (gamma_ref[0] * attn_out + x_ref[0]).astype(o_ref.dtype)


def attention_core(q, k, v, x_chw, gamma, hw, *, tq, tkv):
    """q,k: (B,C8,HWp) bf16; v: (B,C,HWp) bf16; x_chw: (B,C,HWp) f32; gamma: (1,) f32.
    Returns gamma * softmax(q^T k) applied to v plus residual, in (B, C, HWp) f32."""
    B, C8, HWp = q.shape
    C = v.shape[1]
    kernel = functools.partial(_attention_kernel, hw=hw, hw_pad=HWp, tkv=tkv)
    return pl.pallas_call(
        kernel,
        grid=(B, HWp // tq, HWp // tkv),
        in_specs=[
            pl.BlockSpec(memory_space=pltpu.MemorySpace.SMEM),            # gamma scalar
            pl.BlockSpec((1, C8, tq), lambda b, qi, kv: (b, 0, qi)),      # q
            pl.BlockSpec((1, C8, tkv), lambda b, qi, kv: (b, 0, kv)),     # k
            pl.BlockSpec((1, C, tkv), lambda b, qi, kv: (b, 0, kv)),      # v
            pl.BlockSpec((1, C, tq), lambda b, qi, kv: (b, 0, qi)),       # residual x
        ],
        out_specs=pl.BlockSpec((1, C, tq), lambda b, qi, kv: (b, 0, qi)),
        out_shape=jax.ShapeDtypeStruct((B, C, HWp), jnp.float32),
        scratch_shapes=[pltpu.VMEM((1, tq), jnp.float32),    # running max  (lane-dense)
                        pltpu.VMEM((1, tq), jnp.float32),    # running sum
                        pltpu.VMEM((C, tq), jnp.float32)],   # output accumulator
        compiler_params=pltpu.CompilerParams(
            dimension_semantics=("parallel", "parallel", "arbitrary"),
            vmem_limit_bytes=32 * 1024 * 1024),
    )(gamma, q, k, v, x_chw)


def _attention_tile(B, HW):
    """Large tiles (grid-overhead amortized), but keep >= 2 parallel steps for v7x."""
    hw128 = _round_up(HW, 128)
    t = hw128 if hw128 <= 512 else 512
    while t > 128 and B * (_round_up(HW, t) // t) < 2:
        t = max(128, (t // 2) // 128 * 128)
    return t


# --------------------------- AttentionLayer forward ---------------------------

def attention_layer(params, x):
    B, C, H, W = x.shape
    HW = H * W
    C8 = C // 8

    t = _attention_tile(B, HW)
    HWp = _round_up(HW, t)

    # Native NCHW-flattened layout: (B, C, HW) -- pure reshape, no HBM transpose.
    x_chw = x.reshape(B, C, HW).astype(jnp.float32)
    if HWp != HW:
        x_chw = jnp.pad(x_chw, ((0, 0), (0, 0), (0, HWp - HW)))

    # Fused q/k/v 1x1-conv weights: (2*C8 + C, C), applied as W @ X_b per batch.
    w_qkv = jnp.concatenate([params['q_w'].reshape(C8, C),
                             params['k_w'].reshape(C8, C),
                             params['v_w'].reshape(C, C)], axis=0).astype(jnp.bfloat16)
    b_qkv = jnp.concatenate([params['q_b'], params['k_b'], params['v_b']]
                            ).astype(jnp.float32).reshape(-1, 1)

    q, k, v = qkv_projection(x_chw, w_qkv, b_qkv, C8, tn=t)
    out = attention_core(q, k, v, x_chw, params['gamma'].astype(jnp.float32),
                         HW, tq=t, tkv=t)                                # (B, C, HWp)
    if HWp != HW:
        out = out[:, :, :HW]
    return out.reshape(B, C, H, W)


# --------------------------- reference / params / demo ---------------------------

def attention_ref(params, x):
    """Pure-JAX f32 reference matching the PyTorch AttentionLayer forward."""
    B, C, H, W = x.shape
    HW = H * W
    C8 = C // 8
    xf = x.reshape(B, C, HW)
    q = jnp.einsum('oc,bci->bio', params['q_w'].reshape(C8, C), xf) + params['q_b'][None, None, :]
    k = jnp.einsum('oc,bci->boi', params['k_w'].reshape(C8, C), xf) + params['k_b'][None, :, None]
    v = jnp.einsum('oc,bci->boi', params['v_w'].reshape(C, C), xf) + params['v_b'][None, :, None]
    s = jnp.einsum('bio,boj->bij', q, k)
    attn = jax.nn.softmax(s, axis=-1)
    out = jnp.einsum('bcj,bij->bci', v, attn).reshape(B, C, H, W)
    return params['gamma'][0] * out + x


def init_params(key, C):
    C8 = C // 8

    def conv1x1(k, cout, cin):
        kw, kb = jax.random.split(k)
        w = jax.random.normal(kw, (cout, cin, 1, 1), jnp.float32) / jnp.sqrt(float(cin))
        b = jax.random.normal(kb, (cout,), jnp.float32) * 0.01
        return w, b

    kq, kk, kv = jax.random.split(key, 3)
    p = {}
    p['q_w'], p['q_b'] = conv1x1(kq, C8, C)
    p['k_w'], p['k_b'] = conv1x1(kk, C8, C)
    p['v_w'], p['v_b'] = conv1x1(kv, C, C)
    # torch initializes gamma = zeros(1); use a nonzero value here so the
    # attention branch actually contributes to the tested output.
    p['gamma'] = jnp.full((1,), 0.5, jnp.float32)
    return p


if __name__ == "__main__":
    key = jax.random.PRNGKey(0)
    pkey, xkey = jax.random.split(key)
    B, C, H, W = 2, 64, 16, 16            # in_channels must be a multiple of 8 (C//8 heads dim)
    params = init_params(pkey, C)
    x = jax.random.normal(xkey, (B, C, H, W), jnp.float32)

    fwd = jax.jit(attention_layer)
    out = fwd(params, x)
    jax.block_until_ready(out)

    assert out.shape == (B, C, H, W), out.shape
    assert bool(jnp.all(jnp.isfinite(out)))

    # Numerical sanity check vs. pure-JAX f32 reference (kernels feed the MXU bf16,
    # so allow a loose tolerance).
    ref = attention_ref(params, x)
    err = float(jnp.max(jnp.abs(out - ref)))
    assert err < 2e-1, f"max abs err {err}"

    print("KERNEL_OK")
</pallas_src>

<mosaic_0001>
module attributes {stable_mosaic.version = 11 : i64} {
  func.func @_qkv_proj_kernel(%arg0: i32, %arg1: i32, %arg2: memref<1x64x256xf32, #tpu.memory_space<vmem>>, %arg3: memref<80x64xbf16, #tpu.memory_space<vmem>>, %arg4: memref<80x1xf32, #tpu.memory_space<vmem>>, %arg5: memref<1x8x256xbf16, #tpu.memory_space<vmem>>, %arg6: memref<1x8x256xbf16, #tpu.memory_space<vmem>>, %arg7: memref<1x64x256xbf16, #tpu.memory_space<vmem>>) attributes {dimension_semantics = [#tpu.dimension_semantics<parallel>, #tpu.dimension_semantics<parallel>], iteration_bounds = array<i64: 2, 1>, scalar_prefetch = 0 : i64, scratch_operands = 0 : i64, tpu.core_type = #tpu.core_type<tc>, window_params = [{transform_indices = @transform_0, window_bounds = array<i64: 1, 64, 256>}, {pipeline_mode = #tpu.pipeline_mode<synchronous>, transform_indices = @transform_1, window_bounds = array<i64: 80, 64>}, {pipeline_mode = #tpu.pipeline_mode<synchronous>, transform_indices = @transform_2, window_bounds = array<i64: 80, 1>}, {transform_indices = @transform_3, window_bounds = array<i64: 1, 8, 256>}, {transform_indices = @transform_4, window_bounds = array<i64: 1, 8, 256>}, {transform_indices = @transform_5, window_bounds = array<i64: 1, 64, 256>}]} {
    %c0 = arith.constant 0 : index
    %c0_0 = arith.constant 0 : index
    %c0_1 = arith.constant 0 : index
    %0 = vector.load %arg2[%c0, %c0_0, %c0_1] : memref<1x64x256xf32, #tpu.memory_space<vmem>>, vector<1x64x256xf32>
    %1 = vector.shape_cast %0 : vector<1x64x256xf32> to vector<64x256xf32>
    %2 = arith.truncf %1 : vector<64x256xf32> to vector<64x256xbf16>
    %c0_2 = arith.constant 0 : index
    %c0_3 = arith.constant 0 : index
    %3 = vector.load %arg3[%c0_2, %c0_3] : memref<80x64xbf16, #tpu.memory_space<vmem>>, vector<80x64xbf16>
    %cst = arith.constant dense<0.000000e+00> : vector<80x256xf32>
    %4 = tpu.matmul %3, %2, %cst {dimension_numbers = #tpu.dot_dimension_numbers<[1], [0], [0], [1], [0, 0, 1, 1], [], []>} : vector<80x64xbf16>, vector<64x256xbf16>, vector<80x256xf32> -> vector<80x256xf32>
    %c0_4 = arith.constant 0 : index
    %c0_5 = arith.constant 0 : index
    %5 = vector.load %arg4[%c0_4, %c0_5] : memref<80x1xf32, #tpu.memory_space<vmem>>, vector<80x1xf32>
    %6 = vector.broadcast %5 : vector<80x1xf32> to vector<80x256xf32>
    %7 = arith.addf %4, %6 : vector<80x256xf32>
    %8 = vector.extract_strided_slice %7 {offsets = [0, 0], sizes = [8, 256], strides = [1, 1]} : vector<80x256xf32> to vector<8x256xf32>
    %9 = arith.truncf %8 : vector<8x256xf32> to vector<8x256xbf16>
    %c0_6 = arith.constant 0 : index
    %c0_7 = arith.constant 0 : index
    %c0_8 = arith.constant 0 : index
    %10 = vector.load %arg5[%c0_6, %c0_7, %c0_8] : memref<1x8x256xbf16, #tpu.memory_space<vmem>>, vector<1x8x256xbf16>
    %11 = vector.shape_cast %10 : vector<1x8x256xbf16> to vector<8x256xbf16>
    %12 = vector.shape_cast %9 : vector<8x256xbf16> to vector<1x8x256xbf16>
    tpu.vector_store %arg5[%c0_6, %c0_7, %c0_8], %12 {strides = array<i32>} : memref<1x8x256xbf16, #tpu.memory_space<vmem>>, vector<1x8x256xbf16>,
    %13 = vector.extract_strided_slice %7 {offsets = [8, 0], sizes = [8, 256], strides = [1, 1]} : vector<80x256xf32> to vector<8x256xf32>
    %14 = arith.truncf %13 : vector<8x256xf32> to vector<8x256xbf16>
    %c0_9 = arith.constant 0 : index
    %c0_10 = arith.constant 0 : index
    %c0_11 = arith.constant 0 : index
    %15 = vector.load %arg6[%c0_9, %c0_10, %c0_11] : memref<1x8x256xbf16, #tpu.memory_space<vmem>>, vector<1x8x256xbf16>
    %16 = vector.shape_cast %15 : vector<1x8x256xbf16> to vector<8x256xbf16>
    %17 = vector.shape_cast %14 : vector<8x256xbf16> to vector<1x8x256xbf16>
    tpu.vector_store %arg6[%c0_9, %c0_10, %c0_11], %17 {strides = array<i32>} : memref<1x8x256xbf16, #tpu.memory_space<vmem>>, vector<1x8x256xbf16>,
    %18 = vector.extract_strided_slice %7 {offsets = [16, 0], sizes = [64, 256], strides = [1, 1]} : vector<80x256xf32> to vector<64x256xf32>
    %19 = arith.truncf %18 : vector<64x256xf32> to vector<64x256xbf16>
    %c0_12 = arith.constant 0 : index
    %c0_13 = arith.constant 0 : index
    %c0_14 = arith.constant 0 : index
    %20 = vector.load %arg7[%c0_12, %c0_13, %c0_14] : memref<1x64x256xbf16, #tpu.memory_space<vmem>>, vector<1x64x256xbf16>
    %21 = vector.shape_cast %20 : vector<1x64x256xbf16> to vector<64x256xbf16>
    %22 = vector.shape_cast %19 : vector<64x256xbf16> to vector<1x64x256xbf16>
    tpu.vector_store %arg7[%c0_12, %c0_13, %c0_14], %22 {strides = array<i32>} : memref<1x64x256xbf16, #tpu.memory_space<vmem>>, vector<1x64x256xbf16>,
    return
  }
  func.func @transform_0(%arg0: i32, %arg1: i32) -> (i32, i32, i32) {
    %c0_i32 = arith.constant 0 : i32
    %c0_i32_0 = arith.constant 0 : i32
    return %arg0, %c0_i32, %arg1 : i32, i32, i32
  }
  func.func @transform_1(%arg0: i32, %arg1: i32) -> (i32, i32) {
    %c0_i32 = arith.constant 0 : i32
    %c0_i32_0 = arith.constant 0 : i32
    %c0_i32_1 = arith.constant 0 : i32
    return %c0_i32, %c0_i32_0 : i32, i32
  }
  func.func @transform_2(%arg0: i32, %arg1: i32) -> (i32, i32) {
    %c0_i32 = arith.constant 0 : i32
    %c0_i32_0 = arith.constant 0 : i32
    %c0_i32_1 = arith.constant 0 : i32
    return %c0_i32, %c0_i32_0 : i32, i32
  }
  func.func @transform_3(%arg0: i32, %arg1: i32) -> (i32, i32, i32) {
    %c0_i32 = arith.constant 0 : i32
    %c0_i32_0 = arith.constant 0 : i32
    return %arg0, %c0_i32, %arg1 : i32, i32, i32
  }
  func.func @transform_4(%arg0: i32, %arg1: i32) -> (i32, i32, i32) {
    %c0_i32 = arith.constant 0 : i32
    %c0_i32_0 = arith.constant 0 : i32
    return %arg0, %c0_i32, %arg1 : i32, i32, i32
  }
  func.func @transform_5(%arg0: i32, %arg1: i32) -> (i32, i32, i32) {
    %c0_i32 = arith.constant 0 : i32
    %c0_i32_0 = arith.constant 0 : i32
    return %arg0, %c0_i32, %arg1 : i32, i32, i32
  }
}

module attributes {stable_mosaic.version = 11 : i64} {
  func.func @_attention_kernel(%arg0: i32, %arg1: i32, %arg2: i32, %arg3: memref<1xf32, #tpu.memory_space<smem>>, %arg4: memref<1x8x256xbf16, #tpu.memory_space<vmem>>, %arg5: memref<1x8x256xbf16, #tpu.memory_space<vmem>>, %arg6: memref<1x64x256xbf16, #tpu.memory_space<vmem>>, %arg7: memref<1x64x256xf32, #tpu.memory_space<vmem>>, %arg8: memref<1x64x256xf32, #tpu.memory_space<vmem>>, %arg9: memref<1x256xf32, #tpu.memory_space<vmem>>, %arg10: memref<1x256xf32, #tpu.memory_space<vmem>>, %arg11: memref<64x256xf32, #tpu.memory_space<vmem>>) attributes {dimension_semantics = [#tpu.dimension_semantics<parallel>, #tpu.dimension_semantics<parallel>, #tpu.dimension_semantics<arbitrary>], iteration_bounds = array<i64: 2, 1, 1>, scalar_prefetch = 0 : i64, scratch_operands = 3 : i64, tpu.core_type = #tpu.core_type<tc>, window_params = [{transform_indices = @transform_0, window_bounds = array<i64: 1>}, {transform_indices = @transform_1, window_bounds = array<i64: 1, 8, 256>}, {transform_indices = @transform_2, window_bounds = array<i64: 1, 8, 256>}, {transform_indices = @transform_3, window_bounds = array<i64: 1, 64, 256>}, {transform_indices = @transform_4, window_bounds = array<i64: 1, 64, 256>}, {transform_indices = @transform_5, window_bounds = array<i64: 1, 64, 256>}]} {
    %c0_i32 = arith.constant 0 : i32
    %0 = arith.cmpi eq, %arg2, %c0_i32 : i32
    %1 = arith.extui %0 : i1 to i32
    %c0_i32_0 = arith.constant 0 : i32
    %2 = arith.cmpi ne, %1, %c0_i32_0 : i32
    scf.if %2 {
      %cst_26 = arith.constant 0xFF800000 : f32
      %36 = vector.broadcast %cst_26 : f32 to vector<1x256xf32>
      %c0_27 = arith.constant 0 : index
      %c0_28 = arith.constant 0 : index
      %37 = vector.load %arg9[%c0_27, %c0_28] : memref<1x256xf32, #tpu.memory_space<vmem>>, vector<1x256xf32>
      tpu.vector_store %arg9[%c0_27, %c0_28], %36 {strides = array<i32>} : memref<1x256xf32, #tpu.memory_space<vmem>>, vector<1x256xf32>,
      %cst_29 = arith.constant 0.000000e+00 : f32
      %38 = vector.broadcast %cst_29 : f32 to vector<1x256xf32>
      %c0_30 = arith.constant 0 : index
      %c0_31 = arith.constant 0 : index
      %39 = vector.load %arg10[%c0_30, %c0_31] : memref<1x256xf32, #tpu.memory_space<vmem>>, vector<1x256xf32>
      tpu.vector_store %arg10[%c0_30, %c0_31], %38 {strides = array<i32>} : memref<1x256xf32, #tpu.memory_space<vmem>>, vector<1x256xf32>,
      %cst_32 = arith.constant 0.000000e+00 : f32
      %40 = vector.broadcast %cst_32 : f32 to vector<64x256xf32>
      %c0_33 = arith.constant 0 : index
      %c0_34 = arith.constant 0 : index
      %41 = vector.load %arg11[%c0_33, %c0_34] : memref<64x256xf32, #tpu.memory_space<vmem>>, vector<64x256xf32>
      tpu.vector_store %arg11[%c0_33, %c0_34], %40 {strides = array<i32>} : memref<64x256xf32, #tpu.memory_space<vmem>>, vector<64x256xf32>,
    } else {
    }
    %c0 = arith.constant 0 : index
    %c0_1 = arith.constant 0 : index
    %c0_2 = arith.constant 0 : index
    %3 = vector.load %arg4[%c0, %c0_1, %c0_2] : memref<1x8x256xbf16, #tpu.memory_space<vmem>>, vector<1x8x256xbf16>
    %4 = vector.shape_cast %3 : vector<1x8x256xbf16> to vector<8x256xbf16>
    %c0_3 = arith.constant 0 : index
    %c0_4 = arith.constant 0 : index
    %c0_5 = arith.constant 0 : index
    %5 = vector.load %arg5[%c0_3, %c0_4, %c0_5] : memref<1x8x256xbf16, #tpu.memory_space<vmem>>, vector<1x8x256xbf16>
    %6 = vector.shape_cast %5 : vector<1x8x256xbf16> to vector<8x256xbf16>
    %c0_6 = arith.constant 0 : index
    %c0_7 = arith.constant 0 : index
    %c0_8 = arith.constant 0 : index
    %7 = vector.load %arg6[%c0_6, %c0_7, %c0_8] : memref<1x64x256xbf16, #tpu.memory_space<vmem>>, vector<1x64x256xbf16>
    %8 = vector.shape_cast %7 : vector<1x64x256xbf16> to vector<64x256xbf16>
    %cst = arith.constant dense<0.000000e+00> : vector<256x256xf32>
    %9 = tpu.matmul %6, %4, %cst {dimension_numbers = #tpu.dot_dimension_numbers<[0], [0], [1], [1], [0, 1, 1, 1], [], []>} : vector<8x256xbf16>, vector<8x256xbf16>, vector<256x256xf32> -> vector<256x256xf32>
    %c0_9 = arith.constant 0 : index
    %c0_10 = arith.constant 0 : index
    %10 = vector.load %arg9[%c0_9, %c0_10] : memref<1x256xf32, #tpu.memory_space<vmem>>, vector<1x256xf32>
    %cst_11 = arith.constant dense<0xFF800000> : vector<256xf32>
    %11 = vector.multi_reduction <maximumf>, %9, %cst_11 [0] : vector<256x256xf32> to vector<256xf32>
    %12 = vector.shape_cast %11 : vector<256xf32> to vector<1x256xf32>
    %13 = arith.maximumf %10, %12 : vector<1x256xf32>
    %14 = arith.subf %10, %13 : vector<1x256xf32>
    %15 = math.exp %14 : vector<1x256xf32>
    %16 = vector.broadcast %13 : vector<1x256xf32> to vector<256x256xf32>
    %17 = arith.subf %9, %16 : vector<256x256xf32>
    %18 = math.exp %17 : vector<256x256xf32>
    %c0_12 = arith.constant 0 : index
    %c0_13 = arith.constant 0 : index
    %19 = vector.load %arg10[%c0_12, %c0_13] : memref<1x256xf32, #tpu.memory_space<vmem>>, vector<1x256xf32>
    %20 = arith.mulf %15, %19 : vector<1x256xf32>
    %cst_14 = arith.constant dense<0.000000e+00> : vector<256xf32>
    %21 = vector.multi_reduction <add>, %18, %cst_14 [0] : vector<256x256xf32> to vector<256xf32>
    %22 = vector.shape_cast %21 : vector<256xf32> to vector<1x256xf32>
    %23 = arith.addf %20, %22 : vector<1x256xf32>
    %c0_15 = arith.constant 0 : index
    %c0_16 = arith.constant 0 : index
    %24 = vector.load %arg10[%c0_15, %c0_16] : memref<1x256xf32, #tpu.memory_space<vmem>>, vector<1x256xf32>
    tpu.vector_store %arg10[%c0_15, %c0_16], %23 {strides = array<i32>} : memref<1x256xf32, #tpu.memory_space<vmem>>, vector<1x256xf32>,
    %c0_17 = arith.constant 0 : index
    %c0_18 = arith.constant 0 : index
    %25 = vector.load %arg11[%c0_17, %c0_18] : memref<64x256xf32, #tpu.memory_space<vmem>>, vector<64x256xf32>
    %26 = vector.broadcast %15 : vector<1x256xf32> to vector<64x256xf32>
    %27 = arith.mulf %26, %25 : vector<64x256xf32>
    %28 = arith.truncf %18 : vector<256x256xf32> to vector<256x256xbf16>
    %cst_19 = arith.constant dense<0.000000e+00> : vector<64x256xf32>
    %29 = tpu.matmul %8, %28, %cst_19 {dimension_numbers = #tpu.dot_dimension_numbers<[1], [0], [0], [1], [0, 0, 1, 1], [], []>} : vector<64x256xbf16>, vector<256x256xbf16>, vector<64x256xf32> -> vector<64x256xf32>
    %30 = arith.addf %27, %29 : vector<64x256xf32>
    %c0_20 = arith.constant 0 : index
    %c0_21 = arith.constant 0 : index
    %31 = vector.load %arg11[%c0_20, %c0_21] : memref<64x256xf32, #tpu.memory_space<vmem>>, vector<64x256xf32>
    tpu.vector_store %arg11[%c0_20, %c0_21], %30 {strides = array<i32>} : memref<64x256xf32, #tpu.memory_space<vmem>>, vector<64x256xf32>,
    %c0_22 = arith.constant 0 : index
    %c0_23 = arith.constant 0 : index
    %32 = vector.load %arg9[%c0_22, %c0_23] : memref<1x256xf32, #tpu.memory_space<vmem>>, vector<1x256xf32>
    tpu.vector_store %arg9[%c0_22, %c0_23], %13 {strides = array<i32>} : memref<1x256xf32, #tpu.memory_space<vmem>>, vector<1x256xf32>,
    %c0_i32_24 = arith.constant 0 : i32
    %33 = arith.cmpi eq, %arg2, %c0_i32_24 : i32
    %34 = arith.extui %33 : i1 to i32
    %c0_i32_25 = arith.constant 0 : i32
    %35 = arith.cmpi ne, %34, %c0_i32_25 : i32
    scf.if %35 {
      %c0_26 = arith.constant 0 : index
      %c0_27 = arith.constant 0 : index
      %36 = vector.load %arg10[%c0_26, %c0_27] : memref<1x256xf32, #tpu.memory_space<vmem>>, vector<1x256xf32>
      %37 = tpu.reciprocal %36 {approx = true} : vector<1x256xf32> -> vector<1x256xf32>
      %c0_28 = arith.constant 0 : index
      %c0_29 = arith.constant 0 : index
      %38 = vector.load %arg11[%c0_28, %c0_29] : memref<64x256xf32, #tpu.memory_space<vmem>>, vector<64x256xf32>
      %39 = vector.broadcast %37 : vector<1x256xf32> to vector<64x256xf32>
      %40 = arith.mulf %38, %39 : vector<64x256xf32>
      %c0_30 = arith.constant 0 : index
      %41 = memref.load %arg3[%c0_30] : memref<1xf32, #tpu.memory_space<smem>>
      %42 = vector.broadcast %41 : f32 to vector<64x256xf32>
      %43 = arith.mulf %42, %40 : vector<64x256xf32>
      %c0_31 = arith.constant 0 : index
      %c0_32 = arith.constant 0 : index
      %c0_33 = arith.constant 0 : index
      %44 = vector.load %arg7[%c0_31, %c0_32, %c0_33] : memref<1x64x256xf32, #tpu.memory_space<vmem>>, vector<1x64x256xf32>
      %45 = vector.shape_cast %44 : vector<1x64x256xf32> to vector<64x256xf32>
      %46 = arith.addf %43, %45 : vector<64x256xf32>
      %c0_34 = arith.constant 0 : index
      %c0_35 = arith.constant 0 : index
      %c0_36 = arith.constant 0 : index
      %47 = vector.load %arg8[%c0_34, %c0_35, %c0_36] : memref<1x64x256xf32, #tpu.memory_space<vmem>>, vector<1x64x256xf32>
      %48 = vector.shape_cast %47 : vector<1x64x256xf32> to vector<64x256xf32>
      %49 = vector.shape_cast %46 : vector<64x256xf32> to vector<1x64x256xf32>
      tpu.vector_store %arg8[%c0_34, %c0_35, %c0_36], %49 {strides = array<i32>} : memref<1x64x256xf32, #tpu.memory_space<vmem>>, vector<1x64x256xf32>,
    } else {
    }
    return
  }
  func.func @transform_0(%arg0: i32, %arg1: i32, %arg2: i32) -> i32 {
    %c0_i32 = arith.constant 0 : i32
    %c0_i32_0 = arith.constant 0 : i32
    return %c0_i32 : i32
  }
  func.func @transform_1(%arg0: i32, %arg1: i32, %arg2: i32) -> (i32, i32, i32) {
    %c0_i32 = arith.constant 0 : i32
    %c0_i32_0 = arith.constant 0 : i32
    return %arg0, %c0_i32, %arg1 : i32, i32, i32
  }
  func.func @transform_2(%arg0: i32, %arg1: i32, %arg2: i32) -> (i32, i32, i32) {
    %c0_i32 = arith.constant 0 : i32
    %c0_i32_0 = arith.constant 0 : i32
    return %arg0, %c0_i32, %arg2 : i32, i32, i32
  }
  func.func @transform_3(%arg0: i32, %arg1: i32, %arg2: i32) -> (i32, i32, i32) {
    %c0_i32 = arith.constant 0 : i32
    %c0_i32_0 = arith.constant 0 : i32
    return %arg0, %c0_i32, %arg2 : i32, i32, i32
  }
  func.func @transform_4(%arg0: i32, %arg1: i32, %arg2: i32) -> (i32, i32, i32) {
    %c0_i32 = arith.constant 0 : i32
    %c0_i32_0 = arith.constant 0 : i32
    return %arg0, %c0_i32, %arg1 : i32, i32, i32
  }
  func.func @transform_5(%arg0: i32, %arg1: i32, %arg2: i32) -> (i32, i32, i32) {
    %c0_i32 = arith.constant 0 : i32
    %c0_i32_0 = arith.constant 0 : i32
    return %arg0, %c0_i32, %arg1 : i32, i32, i32
  }
}

</mosaic_0001>

<llo_original>
// kernel: attention_layer.2
$region0: #{attention_layer.2}
  #allocation0 [shape = 'u32[]', space=smem, size = 0x4, offset = 0x4, fixed_abs, tag = 'smem constant byte address 0x4 - core index']
  #allocation1 [shape = 'u32[144,128]{1,0:T(1,128)}', space=vmem, size = 0x12000, scoped, tag = 'internal scratch']
  %s0 = inlined_call_operand.vmem [shape: f32[2,64,256], index: 0, kind: input, shape index: {}]
  %s1 = inlined_call_operand.vmem [shape: bf16[80,64], index: 1, kind: input, shape index: {}]
  %s2 = inlined_call_operand.vmem [shape: f32[80,1], index: 2, kind: input, shape index: {}]
  %s3 = inlined_call_operand.vmem [shape: bf16[2,8,256], index: 3, kind: output, shape index: {0}]
  %s4 = inlined_call_operand.vmem [shape: bf16[2,8,256], index: 4, kind: output, shape index: {1}]
  %s5 = inlined_call_operand.vmem [shape: bf16[2,64,256], index: 5, kind: output, shape index: {2}]
  %6 = xla_tuple %s3, %s4, %s5
  %s7 = sld [smem:[#allocation0]]
  $region61: #{attention_layer.2} parent=0
    _
  %s9 = ssub.s32 1, %s7
  %s10 = scalar_select 0, %s9, %s7
  loop: start=0, step=1, limit=4
  $region2: #{attention_layer.2} parent=0 // loop_pre_header
    _
  $region3: #{attention_layer.2} parent=0 // loop_header
    %s12 = sphi 0, %s16
    %p13 = scmp.ge.s32.totalorder %s12, 4
    %s19 = sphi 0, %s31
    %s20 = sphi 0, %s27
    %s21 = sphi 0, %s19
    %s22 = sphi 0, %s20
    %s23 = sphi 0, %s21
    %s24 = sphi 0, %s22
    %s36 = sphi 0, %s38
    %s39 = sphi 0, %s36
    %s40 = sphi 0, %s39
    %s56 = sphi 0, %s40
    %s60 = sphi 0, %s60
    %s62 = sphi 0, %s60
    %s63 = sphi 0, %s62
    %s77 = sphi 0, %s63
    %s81 = sphi 0, %s81
    %s83 = sphi 0, %s81
    %s84 = sphi 0, %s83
    %s98 = sphi 0, %s84
    %s106 = sphi 0, %s108
    %s109 = sphi 0, %s106
    %s110 = sphi 0, %s109
    %s126 = sphi 0, %s110
    %s134 = sphi 0, %s136
    %s137 = sphi 0, %s134
    %s138 = sphi 0, %s137
    %s154 = sphi 0, %s138
    %s162 = sphi 0, %s164
    %s165 = sphi 0, %s162
    %s166 = sphi 0, %s165
    %s182 = sphi 0, %s166
  $region4: #{attention_layer.2} parent=0 // loop_header_branch
    %15 = sbr.rel (%p13) target = $region8
  $region5: #{attention_layer.2} parent=0 // loop_body
    %s17 = ssub.s32 %s12, 1
    %s18 = ssub.s32 %s12, 2
    %s25 = sadd.s32 1, %s20
    %p26 = scmp.ge.s32.totalorder %s25, 1
    %s27 = scalar_select %p26, 0, %s25
    %s28 = sadd.s32 1, %s19
    %s29 = scalar_select %p26, %s28, %s19
    %p30 = scmp.ge.s32.totalorder %s29, 2
    %s31 = scalar_select %p30, 0, %s29
    %s32 = ssub.s32 %s19, %s31
    %s33 = ssub.s32 %s20, %s27
    %s34 = sor.u32 %s32, %s33
    %p35 = scmp.eq.s32.totalorder %s34, 0
    %s37 = sadd.s32 %s36, 1
    %s38 = scalar_select %p35, %s36, %s37
    %p41 = pneg %p35
    %p42 = scmp.eq.s32.totalorder %s12, 1
    %p43 = por %p41, %p42
    %p44 = scmp.ne.s32.totalorder %s36, %s39
    %p45 = scmp.eq.s32.totalorder %s12, 0
    %p46 = por %p44, %p45
    %p47 = scmp.ne.s32.totalorder %s36, %s39
    %p48 = scmp.eq.s32.totalorder %s17, 1
    %p49 = por %p47, %p48
    %p50 = scmp.ne.s32.totalorder %s39, %s40
    %p51 = scmp.eq.s32.totalorder %s17, 0
    %p52 = por %p50, %p51
    %p53 = scmp.ne.s32.totalorder %s39, %s40
    %p54 = scmp.eq.s32.totalorder %s18, 1
    %p55 = por %p53, %p54
    %p57 = scmp.ne.s32.totalorder %s40, %s56
    %p58 = scmp.eq.s32.totalorder %s18, 0
    %p59 = por %p57, %p58
    %s61 = sadd.s32 %s60, 1
    %p64 = scmp.eq.s32.totalorder %s12, 1
    %p65 = scmp.ne.s32.totalorder %s60, %s62
    %p66 = scmp.eq.s32.totalorder %s12, 0
    %p67 = por %p65, %p66
    %p68 = scmp.ne.s32.totalorder %s60, %s62
    %p69 = scmp.eq.s32.totalorder %s17, 1
    %p70 = por %p68, %p69
    %p71 = scmp.ne.s32.totalorder %s62, %s63
    %p72 = scmp.eq.s32.totalorder %s17, 0
    %p73 = por %p71, %p72
    %p74 = scmp.ne.s32.totalorder %s62, %s63
    %p75 = scmp.eq.s32.totalorder %s18, 1
    %p76 = por %p74, %p75
    %p78 = scmp.ne.s32.totalorder %s63, %s77
    %p79 = scmp.eq.s32.totalorder %s18, 0
    %p80 = por %p78, %p79
    %s82 = sadd.s32 %s81, 1
    %p85 = scmp.eq.s32.totalorder %s12, 1
    %p86 = scmp.ne.s32.totalorder %s81, %s83
    %p87 = scmp.eq.s32.totalorder %s12, 0
    %p88 = por %p86, %p87
    %p89 = scmp.ne.s32.totalorder %s81, %s83
    %p90 = scmp.eq.s32.totalorder %s17, 1
    %p91 = por %p89, %p90
    %p92 = scmp.ne.s32.totalorder %s83, %s84
    %p93 = scmp.eq.s32.totalorder %s17, 0
    %p94 = por %p92, %p93
    %p95 = scmp.ne.s32.totalorder %s83, %s84
    %p96 = scmp.eq.s32.totalorder %s18, 1
    %p97 = por %p95, %p96
    %p99 = scmp.ne.s32.totalorder %s84, %s98
    %p100 = scmp.eq.s32.totalorder %s18, 0
    %p101 = por %p99, %p100
    %s102 = ssub.s32 %s19, %s31
    %s103 = ssub.s32 %s20, %s27
    %s104 = sor.u32 %s102, %s103
    %p105 = scmp.eq.s32.totalorder %s104, 0
    %s107 = sadd.s32 %s106, 1
    %s108 = scalar_select %p105, %s106, %s107
    %p111 = pneg %p105
    %p112 = scmp.eq.s32.totalorder %s12, 1
    %p113 = por %p111, %p112
    %p114 = scmp.ne.s32.totalorder %s106, %s109
    %p115 = scmp.eq.s32.totalorder %s12, 0
    %p116 = por %p114, %p115
    %p117 = scmp.ne.s32.totalorder %s106, %s109
    %p118 = scmp.eq.s32.totalorder %s17, 1
    %p119 = por %p117, %p118
    %p120 = scmp.ne.s32.totalorder %s109, %s110
    %p121 = scmp.eq.s32.totalorder %s17, 0
    %p122 = por %p120, %p121
    %p123 = scmp.ne.s32.totalorder %s109, %s110
    %p124 = scmp.eq.s32.totalorder %s18, 1
    %p125 = por %p123, %p124
    %p127 = scmp.ne.s32.totalorder %s110, %s126
    %p128 = scmp.eq.s32.totalorder %s18, 0
    %p129 = por %p127, %p128
    %s130 = ssub.s32 %s19, %s31
    %s131 = ssub.s32 %s20, %s27
    %s132 = sor.u32 %s130, %s131
    %p133 = scmp.eq.s32.totalorder %s132, 0
    %s135 = sadd.s32 %s134, 1
    %s136 = scalar_select %p133, %s134, %s135
    %p139 = pneg %p133
    %p140 = scmp.eq.s32.totalorder %s12, 1
    %p141 = por %p139, %p140
    %p142 = scmp.ne.s32.totalorder %s134, %s137
    %p143 = scmp.eq.s32.totalorder %s12, 0
    %p144 = por %p142, %p143
    %p145 = scmp.ne.s32.totalorder %s134, %s137
    %p146 = scmp.eq.s32.totalorder %s17, 1
    %p147 = por %p145, %p146
    %p148 = scmp.ne.s32.totalorder %s137, %s138
    %p149 = scmp.eq.s32.totalorder %s17, 0
    %p150 = por %p148, %p149
    %p151 = scmp.ne.s32.totalorder %s137, %s138
    %p152 = scmp.eq.s32.totalorder %s18, 1
    %p153 = por %p151, %p152
    %p155 = scmp.ne.s32.totalorder %s138, %s154
    %p156 = scmp.eq.s32.totalorder %s18, 0
    %p157 = por %p155, %p156
    %s158 = ssub.s32 %s19, %s31
    %s159 = ssub.s32 %s20, %s27
    %s160 = sor.u32 %s158, %s159
    %p161 = scmp.eq.s32.totalorder %s160, 0
    %s163 = sadd.s32 %s162, 1
    %s164 = scalar_select %p161, %s162, %s163
    %p167 = pneg %p161
    %p168 = scmp.eq.s32.totalorder %s12, 1
    %p169 = por %p167, %p168
    %p170 = scmp.ne.s32.totalorder %s162, %s165
    %p171 = scmp.eq.s32.totalorder %s12, 0
    %p172 = por %p170, %p171
    %p173 = scmp.ne.s32.totalorder %s162, %s165
    %p174 = scmp.eq.s32.totalorder %s17, 1
    %p175 = por %p173, %p174
    %p176 = scmp.ne.s32.totalorder %s165, %s166
    %p177 = scmp.eq.s32.totalorder %s17, 0
    %p178 = por %p176, %p177
    %p179 = scmp.ne.s32.totalorder %s165, %s166
    %p180 = scmp.eq.s32.totalorder %s18, 1
    %p181 = por %p179, %p180
    %p183 = scmp.ne.s32.totalorder %s166, %s182
    %p184 = scmp.eq.s32.totalorder %s18, 0
    %p185 = por %p183, %p184
    %p186 = scmp.le.s32.totalorder 1, %s12
    %p187 = scmp.lt.s32.totalorder %s12, 3
    %p188 = pnand %p186, %p187
    %p189 = pneg %p188
    // Predicated region
    $region9: #{attention_layer.2} parent=5 // pred_check
      _
    $region10: #{attention_layer.2} parent=5 // pred_check_branch
      %191 = sbr.rel (%p188) target = $region12
    $region11: #{attention_layer.2} parent=5 // pred_region
      %s192 = ssub.s32 %s12, 1
      // Predicated region
      $region13: #{attention_layer.2} parent=11 // pred_check
        %p193 = pneg %p73
      $region14: #{attention_layer.2} parent=11 // pred_check_branch
        %195 = sbr.rel (%p193) target = $region16
      $region15: #{attention_layer.2} parent=11 // pred_region
        _
      $region16: #{attention_layer.2} parent=11 // pred_fallthru
        _
      // Predicated region
      $region17: #{attention_layer.2} parent=11 // pred_check
        %p196 = pneg %p94
      $region18: #{attention_layer.2} parent=11 // pred_check_branch
        %198 = sbr.rel (%p196) target = $region20
      $region19: #{attention_layer.2} parent=11 // pred_region
        _
      $region20: #{attention_layer.2} parent=11 // pred_fallthru
        _
    $region12: #{attention_layer.2} parent=5 // pred_fallthru
      _
    %p199 = scmp.lt.s32.totalorder %s12, 2
    // Predicated region
    $region21: #{attention_layer.2} parent=5 // pred_check
      %p200 = pneg %p199
    $region22: #{attention_layer.2} parent=5 // pred_check_branch
      %202 = sbr.rel (%p200) target = $region24
    $region23: #{attention_layer.2} parent=5 // pred_region
      // Predicated region
      $region25: #{attention_layer.2} parent=23 // pred_check
        %p203 = pneg %p46
      $region26: #{attention_layer.2} parent=23 // pred_check_branch
        %205 = sbr.rel (%p203) target = $region28
      $region27: #{attention_layer.2} parent=23 // pred_region
        %s206 = smul.u32 2, %s20
        %p207 = scmp.lt.s32.totalorder %s19, 1
        %s208 = scalar_select %p207, %s19, 1
        %p209 = scmp.lt.s32.totalorder %s206, 1
        %s210 = scalar_select %p209, %s206, 1
        %s211 = smul.addr %s208, 16
        %s212 = sadd.s32 %s210, %s211
        %s213 = smul.addr %s212, 8
        %s214 = scalar_lea.vmem %s0, %s213
        %s215 = smul.u32 2, %s20
      $region28: #{attention_layer.2} parent=23 // pred_fallthru
        _
    $region24: #{attention_layer.2} parent=5 // pred_fallthru
      _
    %p216 = scmp.le.s32.totalorder 1, %s12
    %p217 = scmp.lt.s32.totalorder %s12, 3
    %p218 = pnand %p216, %p217
    %p219 = pneg %p218
    // Predicated region
    $region29: #{attention_layer.2} parent=5 // pred_check
      _
    $region30: #{attention_layer.2} parent=5 // pred_check_branch
      %221 = sbr.rel (%p218) target = $region32
    $region31: #{attention_layer.2} parent=5 // pred_region
      %s222 = ssub.s32 %s12, 1
      %s223 = smul.u32 2, %s22
      %p224 = scmp.lt.s32.totalorder %s21, 1
      %s225 = scalar_select %p224, %s21, 1
      %p226 = scmp.lt.s32.totalorder %s223, 1
      %s227 = scalar_select %p226, %s223, 1
      %s228 = smul.addr %s225, 16
      %s229 = sadd.s32 %s227, %s228
      %s230 = smul.addr %s229, 8
      %s231 = scalar_lea.vmem %s0, %s230
      %p232 = pneg %p52
      %p233 = pneg %p49
      %p234 = pneg %p73
      %p235 = pneg %p70
      %p236 = pneg %p94
      %p237 = pneg %p91
      %p238 = pneg %p122
      %p239 = pneg %p119
      %s240 = smul.u32 2, %s22
      %p241 = scmp.lt.s32.totalorder %s21, 1
      %s242 = scalar_select %p241, %s21, 1
      %p243 = scmp.lt.s32.totalorder %s240, 1
      %s244 = scalar_select %p243, %s240, 1
      %s245 = smul.addr %s242, 2
      %s246 = sadd.s32 %s244, %s245
      %s247 = smul.addr %s246, 4
      %s248 = scalar_lea.vmem %s3, %s247
      %p249 = pneg %p150
      %p250 = pneg %p147
      %s251 = smul.u32 2, %s22
      %p252 = scmp.lt.s32.totalorder %s21, 1
      %s253 = scalar_select %p252, %s21, 1
      %p254 = scmp.lt.s32.totalorder %s251, 1
      %s255 = scalar_select %p254, %s251, 1
      %s256 = smul.addr %s253, 2
      %s257 = sadd.s32 %s255, %s256
      %s258 = smul.addr %s257, 4
      %s259 = scalar_lea.vmem %s4, %s258
      %p260 = pneg %p178
      %p261 = pneg %p175
      %s262 = smul.u32 2, %s22
      %p263 = scmp.lt.s32.totalorder %s21, 1
      %s264 = scalar_select %p263, %s21, 1
      %p265 = scmp.lt.s32.totalorder %s262, 1
      %s266 = scalar_select %p265, %s262, 1
      %s267 = smul.addr %s264, 16
      %s268 = sadd.s32 %s266, %s267
      %s269 = smul.addr %s268, 4
      %s270 = scalar_lea.vmem %s5, %s269
      %s271 = smul.u32 2, %s22
      %p272 = scmp.lt.s32.totalorder %s21, 1
      %s273 = scalar_select %p272, %s21, 1
      %p274 = scmp.lt.s32.totalorder %s271, 1
      %s275 = scalar_select %p274, %s271, 1
      %s276 = smul.addr %s273, 16
      %s277 = sadd.s32 %s275, %s276
      %s278 = smul.addr %s277, 8
      %s279 = scalar_lea.vmem %s0, %s278
      %s280 = smul.u32 2, %s22
      %s281 = smul.u32 2, %s22
      %p282 = scmp.lt.s32.totalorder %s21, 1
      %s283 = scalar_select %p282, %s21, 1
      %p284 = scmp.lt.s32.totalorder %s281, 1
      %s285 = scalar_select %p284, %s281, 1
      %s286 = smul.addr %s283, 2
      %s287 = sadd.s32 %s285, %s286
      %s288 = smul.addr %s287, 4
      %s289 = scalar_lea.vmem %s3, %s288
      %s290 = smul.u32 2, %s22
      %s291 = smul.u32 2, %s22
      %p292 = scmp.lt.s32.totalorder %s21, 1
      %s293 = scalar_select %p292, %s21, 1
      %p294 = scmp.lt.s32.totalorder %s291, 1
      %s295 = scalar_select %p294, %s291, 1
      %s296 = smul.addr %s293, 2
      %s297 = sadd.s32 %s295, %s296
      %s298 = smul.addr %s297, 4
      %s299 = scalar_lea.vmem %s4, %s298
      %s300 = smul.u32 2, %s22
      %s301 = smul.u32 2, %s22
      %p302 = scmp.lt.s32.totalorder %s21, 1
      %s303 = scalar_select %p302, %s21, 1
      %p304 = scmp.lt.s32.totalorder %s301, 1
      %s305 = scalar_select %p304, %s301, 1
      %s306 = smul.addr %s303, 16
      %s307 = sadd.s32 %s305, %s306
      %s308 = smul.addr %s307, 4
      %s309 = scalar_lea.vmem %s5, %s308
      %s310 = smul.u32 2, %s22
      %v312 = vld [vmem:[%s279] sm:$0xff]
      %v313 = vld [vmem:[%s279 + $0x8] sm:$0xff]
      %v314 = vld [vmem:[%s279 + $0x10] sm:$0xff]
      %v315 = vld [vmem:[%s279 + $0x18] sm:$0xff]
      %v316 = vld [vmem:[%s279 + $0x20] sm:$0xff]
      %v317 = vld [vmem:[%s279 + $0x28] sm:$0xff]
      %v318 = vld [vmem:[%s279 + $0x30] sm:$0xff]
      %v319 = vld [vmem:[%s279 + $0x38] sm:$0xff]
      %v320 = vld [vmem:[%s279 + $0x40] sm:$0xff]
      %v321 = vld [vmem:[%s279 + $0x48] sm:$0xff]
      %v322 = vld [vmem:[%s279 + $0x50] sm:$0xff]
      %v323 = vld [vmem:[%s279 + $0x58] sm:$0xff]
      %v324 = vld [vmem:[%s279 + $0x60] sm:$0xff]
      %v325 = vld [vmem:[%s279 + $0x68] sm:$0xff]
      %v326 = vld [vmem:[%s279 + $0x70] sm:$0xff]
      %v327 = vld [vmem:[%s279 + $0x78] sm:$0xff]
      %v328 = vpack.c.bf16 %v314, %v312
      %v329 = vpack.c.bf16 %v315, %v313
      %v330 = vpack.c.bf16 %v318, %v316
      %v331 = vpack.c.bf16 %v319, %v317
      %v332 = vpack.c.bf16 %v322, %v320
      %v333 = vpack.c.bf16 %v323, %v321
      %v334 = vpack.c.bf16 %v326, %v324
      %v335 = vpack.c.bf16 %v327, %v325
      %v336 = vld [vmem:[%s1] sm:$0xf]
      %v337 = vld [vmem:[%s1 + $0x4] sm:$0xf]
      %v338 = vld [vmem:[%s1 + $0x8] sm:$0xf]
      %v339 = vld [vmem:[%s1 + $0xc] sm:$0xf]
      %v340 = vld [vmem:[%s1 + $0x10] sm:$0xf]
      %v341 = vld [vmem:[%s1 + $0x14] sm:$0xf]
      %v342 = vld [vmem:[%s1 + $0x18] sm:$0xf]
      %v343 = vld [vmem:[%s1 + $0x1c] sm:$0xf]
      %v344 = vld [vmem:[%s1 + $0x20] sm:$0xf]
      %v345 = vld [vmem:[%s1 + $0x24] sm:$0xf]
      %v346 = vld [vmem:[%s2] sm:$0xff]
      %v347 = vld [vmem:[%s2 + $0x8] sm:$0xff]
      %v348 = vld [vmem:[%s2 + $0x10] sm:$0xff]
      %v349 = vld [vmem:[%s2 + $0x18] sm:$0xff]
      %v350 = vld [vmem:[%s2 + $0x20] sm:$0xff]
      %v351 = vld [vmem:[%s2 + $0x28] sm:$0xff]
      %v352 = vld [vmem:[%s2 + $0x30] sm:$0xff]
      %v353 = vld [vmem:[%s2 + $0x38] sm:$0xff]
      %v354 = vld [vmem:[%s2 + $0x40] sm:$0xff]
      %v355 = vld [vmem:[%s2 + $0x48] sm:$0xff]
      %357 = vset.pattern.permute.xlu0 0
      %358 = vperm.xlu0 %357, %v346
      %v359 = vpop.permute.xlu0 %358
      %362 = vset.pattern.permute.xlu0 0
      %363 = vperm.xlu0 %362, %v347
      %v364 = vpop.permute.xlu0 %363
      %367 = vset.pattern.permute.xlu0 0
      %368 = vperm.xlu0 %367, %v348
      %v369 = vpop.permute.xlu0 %368
      %372 = vset.pattern.permute.xlu0 0
      %373 = vperm.xlu0 %372, %v349
      %v374 = vpop.permute.xlu0 %373
      %377 = vset.pattern.permute.xlu0 0
      %378 = vperm.xlu0 %377, %v350
      %v379 = vpop.permute.xlu0 %378
      %382 = vset.pattern.permute.xlu0 0
      %383 = vperm.xlu0 %382, %v351
      %v384 = vpop.permute.xlu0 %383
      %387 = vset.pattern.permute.xlu0 0
      %388 = vperm.xlu0 %387, %v352
      %v389 = vpop.permute.xlu0 %388
      %392 = vset.pattern.permute.xlu0 0
      %393 = vperm.xlu0 %392, %v353
      %v394 = vpop.permute.xlu0 %393
      %397 = vset.pattern.permute.xlu0 0
      %398 = vperm.xlu0 %397, %v354
      %v399 = vpop.permute.xlu0 %398
      %402 = vset.pattern.permute.xlu0 0
      %403 = vperm.xlu0 %402, %v355
      %v404 = vpop.permute.xlu0 %403
      %v416 = vunpack.c.l.b16 %v336
      %v417 = vunpack.c.l.b16 %v337
      %v418 = vunpack.c.l.b16 %v338
      %v419 = vunpack.c.l.b16 %v339
      %v420 = vunpack.c.l.b16 %v340
      %v421 = vunpack.c.l.b16 %v341
      %v422 = vunpack.c.l.b16 %v342
      %v423 = vunpack.c.l.b16 %v343
      %v424 = vunpack.c.l.b16 %v344
      %v425 = vunpack.c.l.b16 %v345
      %v426 = vpack.c.b16 %v417, %v416
      %v427 = vpack.c.b16 %v419, %v418
      %v428 = vpack.c.b16 %v421, %v420
      %v429 = vpack.c.b16 %v423, %v422
      %v430 = vpack.c.b16 %v425, %v424
      %vm431 = vcmask 523264
      %v433 = vsel %vm431, %v426, 0
      %v436 = vsel %vm431, %v427, 0
      %v439 = vsel %vm431, %v428, 0
      %v442 = vsel %vm431, %v429, 0
      %v445 = vsel %vm431, %v430, 0
      %447 = vmatprep.subr.bf16.mxu0 0
      %448 = vmatpush1.bf16.msra.mxu0 0
      %449 = vmatprep.subr.bf16.mxu0 0
      %450 = vmatpush1.bf16.msra.mxu0 0
      %451 = vmatprep.subr.bf16.mxu0 0
      %452 = vmatpush1.bf16.msra.mxu0 0
      %453 = vmatprep.subr.bf16.mxu0 0
      %454 = vmatpush1.bf16.msra.mxu0 0
      %455 = vmatprep.subr.bf16.mxu0 %v335
      %456 = vmatpush1.bf16.msra.mxu0 %v334
      %457 = vmatprep.subr.bf16.mxu0 %v333
      %458 = vmatpush1.bf16.msra.mxu0 %v332
      %459 = vmatprep.subr.bf16.mxu0 %v331
      %460 = vmatpush1.bf16.msra.mxu0 %v330
      %461 = vmatprep.subr.bf16.mxu0 %v329
      %462 = vmatpush1.bf16.msra.mxu0 %v328
      %463 = vmatprep.subr.bf16.mxu0 0
      %464 = vmatpush2.bf16.msra.mxu0 0
      %465 = vmatprep.subr.bf16.mxu0 0
      %466 = vmatpush2.bf16.msra.mxu0 0
      %467 = vmatprep.subr.bf16.mxu0 0
      %468 = vmatpush2.bf16.msra.mxu0 0
      %469 = vmatprep.subr.bf16.mxu0 0
      %470 = vmatpush2.bf16.msra.mxu0 0
      %471 = vmatprep.subr.bf16.mxu0 0
      %472 = vmatpush2.bf16.msra.mxu0 0
      %473 = vmatprep.subr.bf16.mxu0 0
      %474 = vmatpush2.bf16.msra.mxu0 0
      %475 = vmatprep.subr.bf16.mxu0 0
      %476 = vmatpush2.bf16.msra.mxu0 0
      %477 = vmatprep.subr.bf16.mxu0 0
      %478 = vmatpush2.bf16.msra.mxu0 0
      %479 = vmatprep.mubr.bf16.mxu0 0
      %480 = vmatmul.mubr.bf16.gmra.mxu0 %v433
      %v481 = vpop.f32.mrf.mxu0
      %v482 = vadd.f32 %v359, %v481
      %v483 = vpop.f32.mrf.mxu0
      %v484 = vadd.f32 %v359, %v483
      %v485 = vpop.f32.mrf.mxu0
      %v486 = vadd.f32 %v364, %v485
      %v487 = vpop.f32.mrf.mxu0
      %v488 = vadd.f32 %v364, %v487
      %489 = vmatprep.mubr.bf16.mxu0 0
      %490 = vmatmul.mubr.bf16.gmra.mxu0 %v436
      %v491 = vpop.f32.mrf.mxu0
      %v492 = vadd.f32 %v369, %v491
      %v493 = vpop.f32.mrf.mxu0
      %v494 = vadd.f32 %v369, %v493
      %v495 = vpop.f32.mrf.mxu0
      %v496 = vadd.f32 %v374, %v495
      %v497 = vpop.f32.mrf.mxu0
      %v498 = vadd.f32 %v374, %v497
      %499 = vmatprep.mubr.bf16.mxu0 0
      %500 = vmatmul.mubr.bf16.gmra.mxu0 %v439
      %v501 = vpop.f32.mrf.mxu0
      %v502 = vadd.f32 %v379, %v501
      %v503 = vpop.f32.mrf.mxu0
      %v504 = vadd.f32 %v379, %v503
      %v505 = vpop.f32.mrf.mxu0
      %v506 = vadd.f32 %v384, %v505
      %v507 = vpop.f32.mrf.mxu0
      %v508 = vadd.f32 %v384, %v507
      %509 = vmatprep.mubr.bf16.mxu0 0
      %510 = vmatmul.mubr.bf16.gmra.mxu0 %v442
      %v511 = vpop.f32.mrf.mxu0
      %v512 = vadd.f32 %v389, %v511
      %v513 = vpop.f32.mrf.mxu0
      %v514 = vadd.f32 %v389, %v513
      %v515 = vpop.f32.mrf.mxu0
      %v516 = vadd.f32 %v394, %v515
      %v517 = vpop.f32.mrf.mxu0
      %v518 = vadd.f32 %v394, %v517
      %519 = vmatprep.mubr.bf16.mxu0 0
      %520 = vmatmul.mubr.bf16.gmra.mxu0 %v445
      %v521 = vpop.f32.mrf.mxu0
      %v522 = vadd.f32 %v399, %v521
      %v523 = vpop.f32.mrf.mxu0
      %v524 = vadd.f32 %v399, %v523
      %v525 = vpop.f32.mrf.mxu0
      %v526 = vadd.f32 %v404, %v525
      %v527 = vpop.f32.mrf.mxu0
      %v528 = vadd.f32 %v404, %v527
      %529 = vdwg.mxu0
      %v530 = vpack.c.bf16 %v482, %v482
      %v531 = vpack.c.bf16 %v484, %v484
      %v534 = vunpack.c.l.b16 %v530
      %v535 = vunpack.c.l.b16 %v531
      %v536 = vpack.c.b16 %v535, %v534
      %538 = vst [vmem:[%s289] sm:$0xff] %v536
      %v539 = vpack.c.bf16 %v486, %v486
      %v540 = vpack.c.bf16 %v488, %v488
      %v543 = vunpack.c.l.b16 %v539
      %v544 = vunpack.c.l.b16 %v540
      %v545 = vpack.c.b16 %v544, %v543
      %547 = vst [vmem:[%s299] sm:$0xff] %v545
      %v548 = vpack.c.bf16 %v496, %v492
      %v549 = vpack.c.bf16 %v498, %v494
      %v550 = vpack.c.bf16 %v506, %v502
      %v551 = vpack.c.bf16 %v508, %v504
      %v552 = vpack.c.bf16 %v516, %v512
      %v553 = vpack.c.bf16 %v518, %v514
      %v554 = vpack.c.bf16 %v526, %v522
      %v555 = vpack.c.bf16 %v528, %v524
      %v564 = vunpack.c.l.b16 %v548
      %v565 = vunpack.c.l.b16 %v549
      %v566 = vunpack.c.h.b16 %v548
      %v567 = vunpack.c.h.b16 %v549
      %v568 = vunpack.c.l.b16 %v550
      %v569 = vunpack.c.l.b16 %v551
      %v570 = vunpack.c.h.b16 %v550
      %v571 = vunpack.c.h.b16 %v551
      %v572 = vunpack.c.l.b16 %v552
      %v573 = vunpack.c.l.b16 %v553
      %v574 = vunpack.c.h.b16 %v552
      %v575 = vunpack.c.h.b16 %v553
      %v576 = vunpack.c.l.b16 %v554
      %v577 = vunpack.c.l.b16 %v555
      %v578 = vunpack.c.h.b16 %v554
      %v579 = vunpack.c.h.b16 %v555
      %v580 = vpack.c.b16 %v565, %v564
      %v581 = vpack.c.b16 %v567, %v566
      %v582 = vpack.c.b16 %v569, %v568
      %v583 = vpack.c.b16 %v571, %v570
      %v584 = vpack.c.b16 %v573, %v572
      %v585 = vpack.c.b16 %v575, %v574
      %v586 = vpack.c.b16 %v577, %v576
      %v587 = vpack.c.b16 %v579, %v578
      %596 = vst [vmem:[%s309] sm:$0xff] %v580
      %597 = vst [vmem:[%s309 + $0x8] sm:$0xff] %v581
      %598 = vst [vmem:[%s309 + $0x10] sm:$0xff] %v582
      %599 = vst [vmem:[%s309 + $0x18] sm:$0xff] %v583
      %600 = vst [vmem:[%s309 + $0x20] sm:$0xff] %v584
      %601 = vst [vmem:[%s309 + $0x28] sm:$0xff] %v585
      %602 = vst [vmem:[%s309 + $0x30] sm:$0xff] %v586
      %603 = vst [vmem:[%s309 + $0x38] sm:$0xff] %v587
      %s604 = smul.u32 2, %s22
      %p605 = scmp.lt.s32.totalorder %s21, 1
      %s606 = scalar_select %p605, %s21, 1
      %p607 = scmp.lt.s32.totalorder %s604, 1
      %s608 = scalar_select %p607, %s604, 1
      %s609 = smul.addr %s606, 2
      %s610 = sadd.s32 %s608, %s609
      %s611 = smul.addr %s610, 4
      %s612 = scalar_lea.vmem %s3, %s611
      %s613 = smul.u32 2, %s22
      %p614 = scmp.lt.s32.totalorder %s21, 1
      %s615 = scalar_select %p614, %s21, 1
      %p616 = scmp.lt.s32.totalorder %s613, 1
      %s617 = scalar_select %p616, %s613, 1
      %s618 = smul.addr %s615, 2
      %s619 = sadd.s32 %s617, %s618
      %s620 = smul.addr %s619, 4
      %s621 = scalar_lea.vmem %s4, %s620
      %s622 = smul.u32 2, %s22
      %p623 = scmp.lt.s32.totalorder %s21, 1
      %s624 = scalar_select %p623, %s21, 1
      %p625 = scmp.lt.s32.totalorder %s622, 1
      %s626 = scalar_select %p625, %s622, 1
      %s627 = smul.addr %s624, 16
      %s628 = sadd.s32 %s626, %s627
      %s629 = smul.addr %s628, 4
      %s630 = scalar_lea.vmem %s5, %s629
      // Predicated region
      $region33: #{attention_layer.2} parent=31 // pred_check
        %p631 = pneg %p119
      $region34: #{attention_layer.2} parent=31 // pred_check_branch
        %633 = sbr.rel (%p631) target = $region36
      $region35: #{attention_layer.2} parent=31 // pred_region
        %s634 = smul.u32 2, %s22
      $region36: #{attention_layer.2} parent=31 // pred_fallthru
        _
      // Predicated region
      $region37: #{attention_layer.2} parent=31 // pred_check
        %p635 = pneg %p147
      $region38: #{attention_layer.2} parent=31 // pred_check_branch
        %637 = sbr.rel (%p635) target = $region40
      $region39: #{attention_layer.2} parent=31 // pred_region
        %s638 = smul.u32 2, %s22
      $region40: #{attention_layer.2} parent=31 // pred_fallthru
        _
      // Predicated region
      $region41: #{attention_layer.2} parent=31 // pred_check
        %p639 = pneg %p175
      $region42: #{attention_layer.2} parent=31 // pred_check_branch
        %641 = sbr.rel (%p639) target = $region44
      $region43: #{attention_layer.2} parent=31 // pred_region
        %s642 = smul.u32 2, %s22
      $region44: #{attention_layer.2} parent=31 // pred_fallthru
        _
    $region32: #{attention_layer.2} parent=5 // pred_fallthru
      _
    %p643 = scmp.le.s32.totalorder 2, %s12
    // Predicated region
    $region45: #{attention_layer.2} parent=5 // pred_check
      %p644 = pneg %p643
    $region46: #{attention_layer.2} parent=5 // pred_check_branch
      %646 = sbr.rel (%p644) target = $region48
    $region47: #{attention_layer.2} parent=5 // pred_region
      %s647 = ssub.s32 %s12, 2
      // Predicated region
      $region49: #{attention_layer.2} parent=47 // pred_check
        %p648 = pneg %p125
      $region50: #{attention_layer.2} parent=47 // pred_check_branch
        %650 = sbr.rel (%p648) target = $region52
      $region51: #{attention_layer.2} parent=47 // pred_region
        %s651 = smul.u32 2, %s24
        %p652 = scmp.lt.s32.totalorder %s23, 1
        %s653 = scalar_select %p652, %s23, 1
        %p654 = scmp.lt.s32.totalorder %s651, 1
        %s655 = scalar_select %p654, %s651, 1
        %s656 = smul.addr %s653, 2
        %s657 = sadd.s32 %s655, %s656
        %s658 = smul.addr %s657, 4
        %s659 = scalar_lea.vmem %s3, %s658
      $region52: #{attention_layer.2} parent=47 // pred_fallthru
        _
      // Predicated region
      $region53: #{attention_layer.2} parent=47 // pred_check
        %p660 = pneg %p153
      $region54: #{attention_layer.2} parent=47 // pred_check_branch
        %662 = sbr.rel (%p660) target = $region56
      $region55: #{attention_layer.2} parent=47 // pred_region
        %s663 = smul.u32 2, %s24
        %p664 = scmp.lt.s32.totalorder %s23, 1
        %s665 = scalar_select %p664, %s23, 1
        %p666 = scmp.lt.s32.totalorder %s663, 1
        %s667 = scalar_select %p666, %s663, 1
        %s668 = smul.addr %s665, 2
        %s669 = sadd.s32 %s667, %s668
        %s670 = smul.addr %s669, 4
        %s671 = scalar_lea.vmem %s4, %s670
      $region56: #{attention_layer.2} parent=47 // pred_fallthru
        _
      // Predicated region
      $region57: #{attention_layer.2} parent=47 // pred_check
        %p672 = pneg %p181
      $region58: #{attention_layer.2} parent=47 // pred_check_branch
        %674 = sbr.rel (%p672) target = $region60
      $region59: #{attention_layer.2} parent=47 // pred_region
        %s675 = smul.u32 2, %s24
        %p676 = scmp.lt.s32.totalorder %s23, 1
        %s677 = scalar_select %p676, %s23, 1
        %p678 = scmp.lt.s32.totalorder %s675, 1
        %s679 = scalar_select %p678, %s675, 1
        %s680 = smul.addr %s677, 16
        %s681 = sadd.s32 %s679, %s680
        %s682 = smul.addr %s681, 4
        %s683 = scalar_lea.vmem %s5, %s682
      $region60: #{attention_layer.2} parent=47 // pred_fallthru
        _
    $region48: #{attention_layer.2} parent=5 // pred_fallthru
      _
  $region6: #{attention_layer.2} parent=0 // loop_footer
    %s16 = sadd.s32 1, %s12
  $region7: #{attention_layer.2} parent=0 // loop_footer_branch
    %11 = sbr.rel target = $region3
  $region8: #{attention_layer.2} parent=0 // loop_exit
    _

// kernel: attention_layer.3
$region0: #{attention_layer.3}
  #allocation0 [shape = 'u32[]', space=smem, size = 0x4, offset = 0x4, fixed_abs, tag = 'smem constant byte address 0x4 - core index']
  #allocation1 [shape = 'u32[144,128]{1,0:T(1,128)}', space=vmem, size = 0x12000, scoped, tag = 'internal scratch']
  #allocation2 [shape = 'f32[1,256]{1,0:T(1,128)}', space=vmem, size = 0x400, scoped, tag = 'scratch operand']
  #allocation3 [shape = 'f32[1,256]{1,0:T(1,128)}', space=vmem, size = 0x400, scoped, tag = 'scratch operand']
  #allocation4 [shape = 'f32[64,256]{1,0:T(8,128)}', space=vmem, size = 0x10000, scoped, tag = 'scratch operand']
  #allocation5 [shape = 'f32[1]{0:T(128)S(6)}', space=smem, size = 0x200, scoped, tag = 'scoped memory for attention_layer.3']
  %s0 = inlined_call_operand.<no memory space> [shape: f32[1], index: 0, kind: input, shape index: {}]
  %s1 = inlined_call_operand.vmem [shape: bf16[2,8,256], index: 1, kind: input, shape index: {}]
  %s2 = inlined_call_operand.vmem [shape: bf16[2,8,256], index: 2, kind: input, shape index: {}]
  %s3 = inlined_call_operand.vmem [shape: bf16[2,64,256], index: 3, kind: input, shape index: {}]
  %s4 = inlined_call_operand.vmem [shape: f32[2,64,256], index: 4, kind: input, shape index: {}]
  %s5 = inlined_call_operand.vmem [shape: f32[2,64,256], index: 5, kind: output, shape index: {}]
  %s6 = sld [smem:[#allocation0]]
  $region61: #{attention_layer.3} parent=0
    _
  %s8 = ssub.s32 1, %s6
  %s9 = scalar_select 0, %s8, %s6
  %10 = sst [smem:[#allocation5]] %s0
  loop: start=0, step=1, limit=4
  $region2: #{attention_layer.3} parent=0 // loop_pre_header
    _
  $region3: #{attention_layer.3} parent=0 // loop_header
    %s12 = sphi 0, %s16
    %p13 = scmp.ge.s32.totalorder %s12, 4
    %s19 = sphi 0, %s38
    %s20 = sphi 0, %s34
    %s21 = sphi 0, %s30
    %s22 = sphi 0, %s19
    %s23 = sphi 0, %s20
    %s24 = sphi 0, %s21
    %s25 = sphi 0, %s22
    %s26 = sphi 0, %s23
    %s27 = sphi 0, %s24
    %s39 = sphi 0, %s39
    %s41 = sphi 0, %s39
    %s42 = sphi 0, %s41
    %s56 = sphi 0, %s42
    %s64 = sphi 0, %s66
    %s67 = sphi 0, %s64
    %s68 = sphi 0, %s67
    %s84 = sphi 0, %s68
    %s92 = sphi 0, %s94
    %s95 = sphi 0, %s92
    %s96 = sphi 0, %s95
    %s112 = sphi 0, %s96
    %s120 = sphi 0, %s122
    %s123 = sphi 0, %s120
    %s124 = sphi 0, %s123
    %s140 = sphi 0, %s124
    %s148 = sphi 0, %s150
    %s151 = sphi 0, %s148
    %s152 = sphi 0, %s151
    %s168 = sphi 0, %s152
    %s176 = sphi 0, %s178
    %s179 = sphi 0, %s176
    %s180 = sphi 0, %s179
    %s196 = sphi 0, %s180
  $region4: #{attention_layer.3} parent=0 // loop_header_branch
    %15 = sbr.rel (%p13) target = $region8
  $region5: #{attention_layer.3} parent=0 // loop_body
    %s17 = ssub.s32 %s12, 1
    %s18 = ssub.s32 %s12, 2
    %s28 = sadd.s32 1, %s21
    %p29 = scmp.ge.s32.totalorder %s28, 1
    %s30 = scalar_select %p29, 0, %s28
    %s31 = sadd.s32 1, %s20
    %s32 = scalar_select %p29, %s31, %s20
    %p33 = scmp.ge.s32.totalorder %s32, 1
    %s34 = scalar_select %p33, 0, %s32
    %s35 = sadd.s32 1, %s19
    %s36 = scalar_select %p33, %s35, %s19
    %p37 = scmp.ge.s32.totalorder %s36, 2
    %s38 = scalar_select %p37, 0, %s36
    %s40 = sadd.s32 %s39, 1
    %p43 = scmp.eq.s32.totalorder %s12, 1
    %p44 = scmp.ne.s32.totalorder %s39, %s41
    %p45 = scmp.eq.s32.totalorder %s12, 0
    %p46 = por %p44, %p45
    %p47 = scmp.ne.s32.totalorder %s39, %s41
    %p48 = scmp.eq.s32.totalorder %s17, 1
    %p49 = por %p47, %p48
    %p50 = scmp.ne.s32.totalorder %s41, %s42
    %p51 = scmp.eq.s32.totalorder %s17, 0
    %p52 = por %p50, %p51
    %p53 = scmp.ne.s32.totalorder %s41, %s42
    %p54 = scmp.eq.s32.totalorder %s18, 1
    %p55 = por %p53, %p54
    %p57 = scmp.ne.s32.totalorder %s42, %s56
    %p58 = scmp.eq.s32.totalorder %s18, 0
    %p59 = por %p57, %p58
    %s60 = ssub.s32 %s19, %s38
    %s61 = ssub.s32 %s20, %s34
    %s62 = sor.u32 %s60, %s61
    %p63 = scmp.eq.s32.totalorder %s62, 0
    %s65 = sadd.s32 %s64, 1
    %s66 = scalar_select %p63, %s64, %s65
    %p69 = pneg %p63
    %p70 = scmp.eq.s32.totalorder %s12, 1
    %p71 = por %p69, %p70
    %p72 = scmp.ne.s32.totalorder %s64, %s67
    %p73 = scmp.eq.s32.totalorder %s12, 0
    %p74 = por %p72, %p73
    %p75 = scmp.ne.s32.totalorder %s64, %s67
    %p76 = scmp.eq.s32.totalorder %s17, 1
    %p77 = por %p75, %p76
    %p78 = scmp.ne.s32.totalorder %s67, %s68
    %p79 = scmp.eq.s32.totalorder %s17, 0
    %p80 = por %p78, %p79
    %p81 = scmp.ne.s32.totalorder %s67, %s68
    %p82 = scmp.eq.s32.totalorder %s18, 1
    %p83 = por %p81, %p82
    %p85 = scmp.ne.s32.totalorder %s68, %s84
    %p86 = scmp.eq.s32.totalorder %s18, 0
    %p87 = por %p85, %p86
    %s88 = ssub.s32 %s19, %s38
    %s89 = ssub.s32 %s21, %s30
    %s90 = sor.u32 %s88, %s89
    %p91 = scmp.eq.s32.totalorder %s90, 0
    %s93 = sadd.s32 %s92, 1
    %s94 = scalar_select %p91, %s92, %s93
    %p97 = pneg %p91
    %p98 = scmp.eq.s32.totalorder %s12, 1
    %p99 = por %p97, %p98
    %p100 = scmp.ne.s32.totalorder %s92, %s95
    %p101 = scmp.eq.s32.totalorder %s12, 0
    %p102 = por %p100, %p101
    %p103 = scmp.ne.s32.totalorder %s92, %s95
    %p104 = scmp.eq.s32.totalorder %s17, 1
    %p105 = por %p103, %p104
    %p106 = scmp.ne.s32.totalorder %s95, %s96
    %p107 = scmp.eq.s32.totalorder %s17, 0
    %p108 = por %p106, %p107
    %p109 = scmp.ne.s32.totalorder %s95, %s96
    %p110 = scmp.eq.s32.totalorder %s18, 1
    %p111 = por %p109, %p110
    %p113 = scmp.ne.s32.totalorder %s96, %s112
    %p114 = scmp.eq.s32.totalorder %s18, 0
    %p115 = por %p113, %p114
    %s116 = ssub.s32 %s19, %s38
    %s117 = ssub.s32 %s21, %s30
    %s118 = sor.u32 %s116, %s117
    %p119 = scmp.eq.s32.totalorder %s118, 0
    %s121 = sadd.s32 %s120, 1
    %s122 = scalar_select %p119, %s120, %s121
    %p125 = pneg %p119
    %p126 = scmp.eq.s32.totalorder %s12, 1
    %p127 = por %p125, %p126
    %p128 = scmp.ne.s32.totalorder %s120, %s123
    %p129 = scmp.eq.s32.totalorder %s12, 0
    %p130 = por %p128, %p129
    %p131 = scmp.ne.s32.totalorder %s120, %s123
    %p132 = scmp.eq.s32.totalorder %s17, 1
    %p133 = por %p131, %p132
    %p134 = scmp.ne.s32.totalorder %s123, %s124
    %p135 = scmp.eq.s32.totalorder %s17, 0
    %p136 = por %p134, %p135
    %p137 = scmp.ne.s32.totalorder %s123, %s124
    %p138 = scmp.eq.s32.totalorder %s18, 1
    %p139 = por %p137, %p138
    %p141 = scmp.ne.s32.totalorder %s124, %s140
    %p142 = scmp.eq.s32.totalorder %s18, 0
    %p143 = por %p141, %p142
    %s144 = ssub.s32 %s19, %s38
    %s145 = ssub.s32 %s20, %s34
    %s146 = sor.u32 %s144, %s145
    %p147 = scmp.eq.s32.totalorder %s146, 0
    %s149 = sadd.s32 %s148, 1
    %s150 = scalar_select %p147, %s148, %s149
    %p153 = pneg %p147
    %p154 = scmp.eq.s32.totalorder %s12, 1
    %p155 = por %p153, %p154
    %p156 = scmp.ne.s32.totalorder %s148, %s151
    %p157 = scmp.eq.s32.totalorder %s12, 0
    %p158 = por %p156, %p157
    %p159 = scmp.ne.s32.totalorder %s148, %s151
    %p160 = scmp.eq.s32.totalorder %s17, 1
    %p161 = por %p159, %p160
    %p162 = scmp.ne.s32.totalorder %s151, %s152
    %p163 = scmp.eq.s32.totalorder %s17, 0
    %p164 = por %p162, %p163
    %p165 = scmp.ne.s32.totalorder %s151, %s152
    %p166 = scmp.eq.s32.totalorder %s18, 1
    %p167 = por %p165, %p166
    %p169 = scmp.ne.s32.totalorder %s152, %s168
    %p170 = scmp.eq.s32.totalorder %s18, 0
    %p171 = por %p169, %p170
    %s172 = ssub.s32 %s19, %s38
    %s173 = ssub.s32 %s20, %s34
    %s174 = sor.u32 %s172, %s173
    %p175 = scmp.eq.s32.totalorder %s174, 0
    %s177 = sadd.s32 %s176, 1
    %s178 = scalar_select %p175, %s176, %s177
    %p181 = pneg %p175
    %p182 = scmp.eq.s32.totalorder %s12, 1
    %p183 = por %p181, %p182
    %p184 = scmp.ne.s32.totalorder %s176, %s179
    %p185 = scmp.eq.s32.totalorder %s12, 0
    %p186 = por %p184, %p185
    %p187 = scmp.ne.s32.totalorder %s176, %s179
    %p188 = scmp.eq.s32.totalorder %s17, 1
    %p189 = por %p187, %p188
    %p190 = scmp.ne.s32.totalorder %s179, %s180
    %p191 = scmp.eq.s32.totalorder %s17, 0
    %p192 = por %p190, %p191
    %p193 = scmp.ne.s32.totalorder %s179, %s180
    %p194 = scmp.eq.s32.totalorder %s18, 1
    %p195 = por %p193, %p194
    %p197 = scmp.ne.s32.totalorder %s180, %s196
    %p198 = scmp.eq.s32.totalorder %s18, 0
    %p199 = por %p197, %p198
    %p200 = scmp.le.s32.totalorder 1, %s12
    %p201 = scmp.lt.s32.totalorder %s12, 3
    %p202 = pnand %p200, %p201
    %p203 = pneg %p202
    // Predicated region
    $region9: #{attention_layer.3} parent=5 // pred_check
      _
    $region10: #{attention_layer.3} parent=5 // pred_check_branch
      %205 = sbr.rel (%p202) target = $region12
    $region11: #{attention_layer.3} parent=5 // pred_region
      %s206 = ssub.s32 %s12, 1
      // Predicated region
      $region13: #{attention_layer.3} parent=11 // pred_check
        %p207 = pneg %p52
      $region14: #{attention_layer.3} parent=11 // pred_check_branch
        %209 = sbr.rel (%p207) target = $region16
      $region15: #{attention_layer.3} parent=11 // pred_region
        _
      $region16: #{attention_layer.3} parent=11 // pred_fallthru
        _
    $region12: #{attention_layer.3} parent=5 // pred_fallthru
      _
    %p210 = scmp.lt.s32.totalorder %s12, 2
    // Predicated region
    $region17: #{attention_layer.3} parent=5 // pred_check
      %p211 = pneg %p210
    $region18: #{attention_layer.3} parent=5 // pred_check_branch
      %213 = sbr.rel (%p211) target = $region20
    $region19: #{attention_layer.3} parent=5 // pred_region
      // Predicated region
      $region21: #{attention_layer.3} parent=19 // pred_check
        %p214 = pneg %p74
      $region22: #{attention_layer.3} parent=19 // pred_check_branch
        %216 = sbr.rel (%p214) target = $region24
      $region23: #{attention_layer.3} parent=19 // pred_region
        %s217 = smul.u32 2, %s20
        %p218 = scmp.lt.s32.totalorder %s19, 1
        %s219 = scalar_select %p218, %s19, 1
        %p220 = scmp.lt.s32.totalorder %s217, 1
        %s221 = scalar_select %p220, %s217, 1
        %s222 = smul.addr %s219, 2
        %s223 = sadd.s32 %s221, %s222
        %s224 = smul.addr %s223, 4
        %s225 = scalar_lea.vmem %s1, %s224
        %s226 = smul.u32 2, %s20
      $region24: #{attention_layer.3} parent=19 // pred_fallthru
        _
      // Predicated region
      $region25: #{attention_layer.3} parent=19 // pred_check
        %p227 = pneg %p102
      $region26: #{attention_layer.3} parent=19 // pred_check_branch
        %229 = sbr.rel (%p227) target = $region28
      $region27: #{attention_layer.3} parent=19 // pred_region
        %s230 = smul.u32 2, %s21
        %p231 = scmp.lt.s32.totalorder %s19, 1
        %s232 = scalar_select %p231, %s19, 1
        %p233 = scmp.lt.s32.totalorder %s230, 1
        %s234 = scalar_select %p233, %s230, 1
        %s235 = smul.addr %s232, 2
        %s236 = sadd.s32 %s234, %s235
        %s237 = smul.addr %s236, 4
        %s238 = scalar_lea.vmem %s2, %s237
        %s239 = smul.u32 2, %s21
      $region28: #{attention_layer.3} parent=19 // pred_fallthru
        _
      // Predicated region
      $region29: #{attention_layer.3} parent=19 // pred_check
        %p240 = pneg %p130
      $region30: #{attention_layer.3} parent=19 // pred_check_branch
        %242 = sbr.rel (%p240) target = $region32
      $region31: #{attention_layer.3} parent=19 // pred_region
        %s243 = smul.u32 2, %s21
        %p244 = scmp.lt.s32.totalorder %s19, 1
        %s245 = scalar_select %p244, %s19, 1
        %p246 = scmp.lt.s32.totalorder %s243, 1
        %s247 = scalar_select %p246, %s243, 1
        %s248 = smul.addr %s245, 16
        %s249 = sadd.s32 %s247, %s248
        %s250 = smul.addr %s249, 4
        %s251 = scalar_lea.vmem %s3, %s250
        %s252 = smul.u32 2, %s21
      $region32: #{attention_layer.3} parent=19 // pred_fallthru
        _
      // Predicated region
      $region33: #{attention_layer.3} parent=19 // pred_check
        %p253 = pneg %p158
      $region34: #{attention_layer.3} parent=19 // pred_check_branch
        %255 = sbr.rel (%p253) target = $region36
      $region35: #{attention_layer.3} parent=19 // pred_region
        %s256 = smul.u32 2, %s20
        %p257 = scmp.lt.s32.totalorder %s19, 1
        %s258 = scalar_select %p257, %s19, 1
        %p259 = scmp.lt.s32.totalorder %s256, 1
        %s260 = scalar_select %p259, %s256, 1
        %s261 = smul.addr %s258, 16
        %s262 = sadd.s32 %s260, %s261
        %s263 = smul.addr %s262, 8
        %s264 = scalar_lea.vmem %s4, %s263
        %s265 = smul.u32 2, %s20
      $region36: #{attention_layer.3} parent=19 // pred_fallthru
        _
    $region20: #{attention_layer.3} parent=5 // pred_fallthru
      _
    %p266 = scmp.le.s32.totalorder 1, %s12
    %p267 = scmp.lt.s32.totalorder %s12, 3
    %p268 = pnand %p266, %p267
    %p269 = pneg %p268
    // Predicated region
    $region37: #{attention_layer.3} parent=5 // pred_check
      _
    $region38: #{attention_layer.3} parent=5 // pred_check_branch
      %271 = sbr.rel (%p268) target = $region40
    $region39: #{attention_layer.3} parent=5 // pred_region
      %s272 = ssub.s32 %s12, 1
      %p273 = pneg %p52
      %p274 = pneg %p49
      %s275 = smul.u32 2, %s23
      %p276 = scmp.lt.s32.totalorder %s22, 1
      %s277 = scalar_select %p276, %s22, 1
      %p278 = scmp.lt.s32.totalorder %s275, 1
      %s279 = scalar_select %p278, %s275, 1
      %s280 = smul.addr %s277, 2
      %s281 = sadd.s32 %s279, %s280
      %s282 = smul.addr %s281, 4
      %s283 = scalar_lea.vmem %s1, %s282
      %p284 = pneg %p80
      %p285 = pneg %p77
      %s286 = smul.u32 2, %s24
      %p287 = scmp.lt.s32.totalorder %s22, 1
      %s288 = scalar_select %p287, %s22, 1
      %p289 = scmp.lt.s32.totalorder %s286, 1
      %s290 = scalar_select %p289, %s286, 1
      %s291 = smul.addr %s288, 2
      %s292 = sadd.s32 %s290, %s291
      %s293 = smul.addr %s292, 4
      %s294 = scalar_lea.vmem %s2, %s293
      %p295 = pneg %p108
      %p296 = pneg %p105
      %s297 = smul.u32 2, %s24
      %p298 = scmp.lt.s32.totalorder %s22, 1
      %s299 = scalar_select %p298, %s22, 1
      %p300 = scmp.lt.s32.totalorder %s297, 1
      %s301 = scalar_select %p300, %s297, 1
      %s302 = smul.addr %s299, 16
      %s303 = sadd.s32 %s301, %s302
      %s304 = smul.addr %s303, 4
      %s305 = scalar_lea.vmem %s3, %s304
      %p306 = pneg %p136
      %p307 = pneg %p133
      %s308 = smul.u32 2, %s23
      %p309 = scmp.lt.s32.totalorder %s22, 1
      %s310 = scalar_select %p309, %s22, 1
      %p311 = scmp.lt.s32.totalorder %s308, 1
      %s312 = scalar_select %p311, %s308, 1
      %s313 = smul.addr %s310, 16
      %s314 = sadd.s32 %s312, %s313
      %s315 = smul.addr %s314, 8
      %s316 = scalar_lea.vmem %s4, %s315
      %p317 = pneg %p164
      %p318 = pneg %p161
      %p319 = pneg %p192
      %p320 = pneg %p189
      %s321 = smul.u32 2, %s23
      %p322 = scmp.lt.s32.totalorder %s22, 1
      %s323 = scalar_select %p322, %s22, 1
      %p324 = scmp.lt.s32.totalorder %s321, 1
      %s325 = scalar_select %p324, %s321, 1
      %s326 = smul.addr %s323, 16
      %s327 = sadd.s32 %s325, %s326
      %s328 = smul.addr %s327, 8
      %s329 = scalar_lea.vmem %s5, %s328
      %s330 = smul.u32 2, %s23
      %p331 = scmp.lt.s32.totalorder %s22, 1
      %s332 = scalar_select %p331, %s22, 1
      %p333 = scmp.lt.s32.totalorder %s330, 1
      %s334 = scalar_select %p333, %s330, 1
      %s335 = smul.addr %s332, 2
      %s336 = sadd.s32 %s334, %s335
      %s337 = smul.addr %s336, 4
      %s338 = scalar_lea.vmem %s1, %s337
      %s339 = smul.u32 2, %s23
      %s340 = smul.u32 2, %s24
      %p341 = scmp.lt.s32.totalorder %s22, 1
      %s342 = scalar_select %p341, %s22, 1
      %p343 = scmp.lt.s32.totalorder %s340, 1
      %s344 = scalar_select %p343, %s340, 1
      %s345 = smul.addr %s342, 2
      %s346 = sadd.s32 %s344, %s345
      %s347 = smul.addr %s346, 4
      %s348 = scalar_lea.vmem %s2, %s347
      %s349 = smul.u32 2, %s24
      %s350 = smul.u32 2, %s24
      %p351 = scmp.lt.s32.totalorder %s22, 1
      %s352 = scalar_select %p351, %s22, 1
      %p353 = scmp.lt.s32.totalorder %s350, 1
      %s354 = scalar_select %p353, %s350, 1
      %s355 = smul.addr %s352, 16
      %s356 = sadd.s32 %s354, %s355
      %s357 = smul.addr %s356, 4
      %s358 = scalar_lea.vmem %s3, %s357
      %s359 = smul.u32 2, %s24
      %s360 = smul.u32 2, %s23
      %p361 = scmp.lt.s32.totalorder %s22, 1
      %s362 = scalar_select %p361, %s22, 1
      %p363 = scmp.lt.s32.totalorder %s360, 1
      %s364 = scalar_select %p363, %s360, 1
      %s365 = smul.addr %s362, 16
      %s366 = sadd.s32 %s364, %s365
      %s367 = smul.addr %s366, 8
      %s368 = scalar_lea.vmem %s4, %s367
      %s369 = smul.u32 2, %s23
      %s370 = smul.u32 2, %s23
      %p371 = scmp.lt.s32.totalorder %s22, 1
      %s372 = scalar_select %p371, %s22, 1
      %p373 = scmp.lt.s32.totalorder %s370, 1
      %s374 = scalar_select %p373, %s370, 1
      %s375 = smul.addr %s372, 16
      %s376 = sadd.s32 %s374, %s375
      %s377 = smul.addr %s376, 8
      %s378 = scalar_lea.vmem %s5, %s377
      %s379 = smul.u32 2, %s23
      %p381 = scmp.eq.s32.totalorder %s24, 0
      // Predicated region
      $region41: #{attention_layer.3} parent=39 // pred_check
        %p382 = pneg %p381
      $region42: #{attention_layer.3} parent=39 // pred_check_branch
        %384 = sbr.rel (%p382) target = $region44
      $region43: #{attention_layer.3} parent=39 // pred_region
        %v385 = vlaneseq
        %vm386 = vcmp.ge.s32.totalorder %v385, 0
        %vm387 = vcmp.lt.s32.totalorder %v385, 256
        %vm388 = vmand %vm386, %vm387
        %389 = vst.msk [vmem:[#allocation2] sm:$0x3] %vm388, -inf
        %390 = vst.msk [vmem:[#allocation3] sm:$0x3] %vm388, 0.0
        %391 = vst [vmem:[#allocation4] sm:$0xff] 0.0
        %392 = vst [vmem:[#allocation4 + $0x8] sm:$0xff] 0.0
        %393 = vst [vmem:[#allocation4 + $0x10] sm:$0xff] 0.0
        %394 = vst [vmem:[#allocation4 + $0x18] sm:$0xff] 0.0
        %395 = vst [vmem:[#allocation4 + $0x20] sm:$0xff] 0.0
        %396 = vst [vmem:[#allocation4 + $0x28] sm:$0xff] 0.0
        %397 = vst [vmem:[#allocation4 + $0x30] sm:$0xff] 0.0
        %398 = vst [vmem:[#allocation4 + $0x38] sm:$0xff] 0.0
        %399 = vst [vmem:[#allocation4 + $0x40] sm:$0xff] 0.0
        %400 = vst [vmem:[#allocation4 + $0x48] sm:$0xff] 0.0
        %401 = vst [vmem:[#allocation4 + $0x50] sm:$0xff] 0.0
        %402 = vst [vmem:[#allocation4 + $0x58] sm:$0xff] 0.0
        %403 = vst [vmem:[#allocation4 + $0x60] sm:$0xff] 0.0
        %404 = vst [vmem:[#allocation4 + $0x68] sm:$0xff] 0.0
        %405 = vst [vmem:[#allocation4 + $0x70] sm:$0xff] 0.0
        %406 = vst [vmem:[#allocation4 + $0x78] sm:$0xff] 0.0
      $region44: #{attention_layer.3} parent=39 // pred_fallthru
        _
      %v407 = vld [vmem:[%s338] sm:$0xff]
      %v408 = vld [vmem:[%s348] sm:$0xff]
      %v409 = vld [vmem:[%s358] sm:$0xff]
      %v410 = vld [vmem:[%s358 + $0x8] sm:$0xff]
      %v411 = vld [vmem:[%s358 + $0x10] sm:$0xff]
      %v412 = vld [vmem:[%s358 + $0x18] sm:$0xff]
      %v413 = vld [vmem:[%s358 + $0x20] sm:$0xff]
      %v414 = vld [vmem:[%s358 + $0x28] sm:$0xff]
      %v415 = vld [vmem:[%s358 + $0x30] sm:$0xff]
      %v416 = vld [vmem:[%s358 + $0x38] sm:$0xff]
      %v418 = vunpack.c.l.b16 %v408
      %v419 = vunpack.c.h.b16 %v408
      %v420 = vpack.c.b16 %v418, %v418
      %v421 = vpack.c.b16 %v419, %v419
      %424 = vxpose.xlu0.c.b16.start [1/8] %v420, 128
      %425 = vxpose.xlu0.c.b16.cont [2/8] 0, 128
      %426 = vxpose.xlu0.c.b16.cont [3/8] 0, 128
      %427 = vxpose.xlu0.c.b16.cont [4/8] 0, 128
      %428 = vxpose.xlu0.c.b16.cont [5/8] 0, 128
      %429 = vxpose.xlu0.c.b16.cont [6/8] 0, 128
      %430 = vxpose.xlu0.c.b16.cont [7/8] 0, 128
      %431 = vxpose.xlu0.c.b16.end [8/8] 0, 128
      %v432 = vpop.trf.xlu0
      %v433 = vpop.trf.xlu0
      %v434 = vpop.trf.xlu0
      %v435 = vpop.trf.xlu0
      %v436 = vpop.trf.xlu0
      %v437 = vpop.trf.xlu0
      %v438 = vpop.trf.xlu0
      %v439 = vpop.trf.xlu0
      %440 = vxpose.xlu0.c.b16.start [1/8] %v421, 128
      %441 = vxpose.xlu0.c.b16.cont [2/8] 0, 128
      %442 = vxpose.xlu0.c.b16.cont [3/8] 0, 128
      %443 = vxpose.xlu0.c.b16.cont [4/8] 0, 128
      %444 = vxpose.xlu0.c.b16.cont [5/8] 0, 128
      %445 = vxpose.xlu0.c.b16.cont [6/8] 0, 128
      %446 = vxpose.xlu0.c.b16.cont [7/8] 0, 128
      %447 = vxpose.xlu0.c.b16.end [8/8] 0, 128
      %v448 = vpop.trf.xlu0
      %v449 = vpop.trf.xlu0
      %v450 = vpop.trf.xlu0
      %v451 = vpop.trf.xlu0
      %v452 = vpop.trf.xlu0
      %v453 = vpop.trf.xlu0
      %v454 = vpop.trf.xlu0
      %v455 = vpop.trf.xlu0
      %v457 = vunpack.c.l.b16 %v407
      %v458 = vunpack.c.h.b16 %v407
      %v459 = vpack.c.b16 %v457, %v457
      %v460 = vpack.c.b16 %v458, %v458
      %vm461 = vcmask 64512
      %v463 = vsel %vm461, %v432, 0
      %v466 = vsel %vm461, %v433, 0
      %v469 = vsel %vm461, %v434, 0
      %v472 = vsel %vm461, %v435, 0
      %v475 = vsel %vm461, %v436, 0
      %v478 = vsel %vm461, %v437, 0
      %v481 = vsel %vm461, %v438, 0
      %v484 = vsel %vm461, %v439, 0
      %v487 = vsel %vm461, %v448, 0
      %v490 = vsel %vm461, %v449, 0
      %v493 = vsel %vm461, %v450, 0
      %v496 = vsel %vm461, %v451, 0
      %v499 = vsel %vm461, %v452, 0
      %v502 = vsel %vm461, %v453, 0
      %v505 = vsel %vm461, %v454, 0
      %v508 = vsel %vm461, %v455, 0
      %vm510 = vcmask 1043456
      %v512 = vsel %vm510, %v459, 0
      %v515 = vsel %vm510, %v460, 0
      %517 = vmatprep.subr.bf16.mxu0 0
      %518 = vmatpush1.bf16.msra.mxu0 0
      %519 = vmatprep.subr.bf16.mxu0 0
      %520 = vmatpush1.bf16.msra.mxu0 0
      %521 = vmatprep.subr.bf16.mxu0 0
      %522 = vmatpush1.bf16.msra.mxu0 0
      %523 = vmatprep.subr.bf16.mxu0 0
      %524 = vmatpush1.bf16.msra.mxu0 0
      %525 = vmatprep.subr.bf16.mxu0 0
      %526 = vmatpush1.bf16.msra.mxu0 0
      %527 = vmatprep.subr.bf16.mxu0 0
      %528 = vmatpush1.bf16.msra.mxu0 0
      %529 = vmatprep.subr.bf16.mxu0 0
      %530 = vmatpush1.bf16.msra.mxu0 0
      %531 = vmatprep.subr.bf16.mxu0 %v515
      %532 = vmatpush1.bf16.msra.mxu0 %v512
      %533 = vmatprep.subr.bf16.mxu0 0
      %534 = vmatpush2.bf16.msra.mxu0 0
      %535 = vmatprep.subr.bf16.mxu0 0
      %536 = vmatpush2.bf16.msra.mxu0 0
      %537 = vmatprep.subr.bf16.mxu0 0
      %538 = vmatpush2.bf16.msra.mxu0 0
      %539 = vmatprep.subr.bf16.mxu0 0
      %540 = vmatpush2.bf16.msra.mxu0 0
      %541 = vmatprep.subr.bf16.mxu0 0
      %542 = vmatpush2.bf16.msra.mxu0 0
      %543 = vmatprep.subr.bf16.mxu0 0
      %544 = vmatpush2.bf16.msra.mxu0 0
      %545 = vmatprep.subr.bf16.mxu0 0
      %546 = vmatpush2.bf16.msra.mxu0 0
      %547 = vmatprep.subr.bf16.mxu0 0
      %548 = vmatpush2.bf16.msra.mxu0 0
      %549 = vmatprep.mubr.bf16.mxu0 0
      %550 = vmatmul.mubr.bf16.gmra.mxu0 %v463
      %v551 = vpop.f32.mrf.mxu0
      %v552 = vadd.f32 0.0, %v551
      %v553 = vpop.f32.mrf.mxu0
      %v554 = vadd.f32 0.0, %v553
      %v555 = vpop.f32.mrf.mxu0
      %v556 = vadd.f32 0.0, %v555
      %v557 = vpop.f32.mrf.mxu0
      %v558 = vadd.f32 0.0, %v557
      %559 = vmatprep.mubr.bf16.mxu0 0
      %560 = vmatmul.mubr.bf16.gmra.mxu0 %v466
      %v561 = vpop.f32.mrf.mxu0
      %v562 = vadd.f32 0.0, %v561
      %v563 = vpop.f32.mrf.mxu0
      %v564 = vadd.f32 0.0, %v563
      %v565 = vpop.f32.mrf.mxu0
      %v566 = vadd.f32 0.0, %v565
      %v567 = vpop.f32.mrf.mxu0
      %v568 = vadd.f32 0.0, %v567
      %569 = vmatprep.mubr.bf16.mxu0 0
      %570 = vmatmul.mubr.bf16.gmra.mxu0 %v469
      %v571 = vpop.f32.mrf.mxu0
      %v572 = vadd.f32 0.0, %v571
      %v573 = vpop.f32.mrf.mxu0
      %v574 = vadd.f32 0.0, %v573
      %v575 = vpop.f32.mrf.mxu0
      %v576 = vadd.f32 0.0, %v575
      %v577 = vpop.f32.mrf.mxu0
      %v578 = vadd.f32 0.0, %v577
      %579 = vmatprep.mubr.bf16.mxu0 0
      %580 = vmatmul.mubr.bf16.gmra.mxu0 %v472
      %v581 = vpop.f32.mrf.mxu0
      %v582 = vadd.f32 0.0, %v581
      %v583 = vpop.f32.mrf.mxu0
      %v584 = vadd.f32 0.0, %v583
      %v585 = vpop.f32.mrf.mxu0
      %v586 = vadd.f32 0.0, %v585
      %v587 = vpop.f32.mrf.mxu0
      %v588 = vadd.f32 0.0, %v587
      %589 = vmatprep.mubr.bf16.mxu0 0
      %590 = vmatmul.mubr.bf16.gmra.mxu0 %v475
      %v591 = vpop.f32.mrf.mxu0
      %v592 = vadd.f32 0.0, %v591
      %v593 = vpop.f32.mrf.mxu0
      %v594 = vadd.f32 0.0, %v593
      %v595 = vpop.f32.mrf.mxu0
      %v596 = vadd.f32 0.0, %v595
      %v597 = vpop.f32.mrf.mxu0
      %v598 = vadd.f32 0.0, %v597
      %599 = vmatprep.mubr.bf16.mxu0 0
      %600 = vmatmul.mubr.bf16.gmra.mxu0 %v478
      %v601 = vpop.f32.mrf.mxu0
      %v602 = vadd.f32 0.0, %v601
      %v603 = vpop.f32.mrf.mxu0
      %v604 = vadd.f32 0.0, %v603
      %v605 = vpop.f32.mrf.mxu0
      %v606 = vadd.f32 0.0, %v605
      %v607 = vpop.f32.mrf.mxu0
      %v608 = vadd.f32 0.0, %v607
      %609 = vmatprep.mubr.bf16.mxu0 0
      %610 = vmatmul.mubr.bf16.gmra.mxu0 %v481
      %v611 = vpop.f32.mrf.mxu0
      %v612 = vadd.f32 0.0, %v611
      %v613 = vpop.f32.mrf.mxu0
      %v614 = vadd.f32 0.0, %v613
      %v615 = vpop.f32.mrf.mxu0
      %v616 = vadd.f32 0.0, %v615
      %v617 = vpop.f32.mrf.mxu0
      %v618 = vadd.f32 0.0, %v617
      %619 = vmatprep.mubr.bf16.mxu0 0
      %620 = vmatmul.mubr.bf16.gmra.mxu0 %v484
      %v621 = vpop.f32.mrf.mxu0
      %v622 = vadd.f32 0.0, %v621
      %v623 = vpop.f32.mrf.mxu0
      %v624 = vadd.f32 0.0, %v623
      %v625 = vpop.f32.mrf.mxu0
      %v626 = vadd.f32 0.0, %v625
      %v627 = vpop.f32.mrf.mxu0
      %v628 = vadd.f32 0.0, %v627
      %629 = vmatprep.mubr.bf16.mxu0 0
      %630 = vmatmul.mubr.bf16.gmra.mxu0 %v487
      %v631 = vpop.f32.mrf.mxu0
      %v632 = vadd.f32 0.0, %v631
      %v633 = vpop.f32.mrf.mxu0
      %v634 = vadd.f32 0.0, %v633
      %v635 = vpop.f32.mrf.mxu0
      %v636 = vadd.f32 0.0, %v635
      %v637 = vpop.f32.mrf.mxu0
      %v638 = vadd.f32 0.0, %v637
      %639 = vmatprep.mubr.bf16.mxu0 0
      %640 = vmatmul.mubr.bf16.gmra.mxu0 %v490
      %v641 = vpop.f32.mrf.mxu0
      %v642 = vadd.f32 0.0, %v641
      %v643 = vpop.f32.mrf.mxu0
      %v644 = vadd.f32 0.0, %v643
      %v645 = vpop.f32.mrf.mxu0
      %v646 = vadd.f32 0.0, %v645
      %v647 = vpop.f32.mrf.mxu0
      %v648 = vadd.f32 0.0, %v647
      %649 = vmatprep.mubr.bf16.mxu0 0
      %650 = vmatmul.mubr.bf16.gmra.mxu0 %v493
      %v651 = vpop.f32.mrf.mxu0
      %v652 = vadd.f32 0.0, %v651
      %v653 = vpop.f32.mrf.mxu0
      %v654 = vadd.f32 0.0, %v653
      %v655 = vpop.f32.mrf.mxu0
      %v656 = vadd.f32 0.0, %v655
      %v657 = vpop.f32.mrf.mxu0
      %v658 = vadd.f32 0.0, %v657
      %659 = vmatprep.mubr.bf16.mxu0 0
      %660 = vmatmul.mubr.bf16.gmra.mxu0 %v496
      %v661 = vpop.f32.mrf.mxu0
      %v662 = vadd.f32 0.0, %v661
      %v663 = vpop.f32.mrf.mxu0
      %v664 = vadd.f32 0.0, %v663
      %v665 = vpop.f32.mrf.mxu0
      %v666 = vadd.f32 0.0, %v665
      %v667 = vpop.f32.mrf.mxu0
      %v668 = vadd.f32 0.0, %v667
      %669 = vmatprep.mubr.bf16.mxu0 0
      %670 = vmatmul.mubr.bf16.gmra.mxu0 %v499
      %v671 = vpop.f32.mrf.mxu0
      %v672 = vadd.f32 0.0, %v671
      %v673 = vpop.f32.mrf.mxu0
      %v674 = vadd.f32 0.0, %v673
      %v675 = vpop.f32.mrf.mxu0
      %v676 = vadd.f32 0.0, %v675
      %v677 = vpop.f32.mrf.mxu0
      %v678 = vadd.f32 0.0, %v677
      %679 = vmatprep.mubr.bf16.mxu0 0
      %680 = vmatmul.mubr.bf16.gmra.mxu0 %v502
      %v681 = vpop.f32.mrf.mxu0
      %v682 = vadd.f32 0.0, %v681
      %v683 = vpop.f32.mrf.mxu0
      %v684 = vadd.f32 0.0, %v683
      %v685 = vpop.f32.mrf.mxu0
      %v686 = vadd.f32 0.0, %v685
      %v687 = vpop.f32.mrf.mxu0
      %v688 = vadd.f32 0.0, %v687
      %689 = vmatprep.mubr.bf16.mxu0 0
      %690 = vmatmul.mubr.bf16.gmra.mxu0 %v505
      %v691 = vpop.f32.mrf.mxu0
      %v692 = vadd.f32 0.0, %v691
      %v693 = vpop.f32.mrf.mxu0
      %v694 = vadd.f32 0.0, %v693
      %v695 = vpop.f32.mrf.mxu0
      %v696 = vadd.f32 0.0, %v695
      %v697 = vpop.f32.mrf.mxu0
      %v698 = vadd.f32 0.0, %v697
      %699 = vmatprep.mubr.bf16.mxu0 0
      %700 = vmatmul.mubr.bf16.gmra.mxu0 %v508
      %v701 = vpop.f32.mrf.mxu0
      %v702 = vadd.f32 0.0, %v701
      %v703 = vpop.f32.mrf.mxu0
      %v704 = vadd.f32 0.0, %v703
      %v705 = vpop.f32.mrf.mxu0
      %v706 = vadd.f32 0.0, %v705
      %v707 = vpop.f32.mrf.mxu0
      %v708 = vadd.f32 0.0, %v707
      %709 = vdwg.mxu0
      %v710 = vld [vmem:[#allocation2] sm:$0x3]
      %v711 = vmax.f32 %v552, %v562
      %v712 = vmax.f32 %v556, %v566
      %v713 = vmax.f32 %v711, %v572
      %v714 = vmax.f32 %v712, %v576
      %v715 = vmax.f32 %v713, %v582
      %v716 = vmax.f32 %v714, %v586
      %v717 = vmax.f32 %v715, %v592
      %v718 = vmax.f32 %v716, %v596
      %v719 = vmax.f32 %v717, %v602
      %v720 = vmax.f32 %v718, %v606
      %v721 = vmax.f32 %v719, %v612
      %v722 = vmax.f32 %v720, %v616
      %v723 = vmax.f32 %v721, %v622
      %v724 = vmax.f32 %v722, %v626
      %v725 = vmax.f32 %v723, %v632
      %v726 = vmax.f32 %v724, %v636
      %v727 = vmax.f32 %v725, %v642
      %v728 = vmax.f32 %v726, %v646
      %v729 = vmax.f32 %v727, %v652
      %v730 = vmax.f32 %v728, %v656
      %v731 = vmax.f32 %v729, %v662
      %v732 = vmax.f32 %v730, %v666
      %v733 = vmax.f32 %v731, %v672
      %v734 = vmax.f32 %v732, %v676
      %v735 = vmax.f32 %v733, %v682
      %v736 = vmax.f32 %v734, %v686
      %v737 = vmax.f32 %v735, %v692
      %v738 = vmax.f32 %v736, %v696
      %v739 = vmax.f32 %v737, %v702
      %v740 = vmax.f32 %v738, %v706
      %v741 = vmax.f32 %v739, %v740
      %v742 = vrot.slane %v741, 4
      %v743 = vmax.f32 %v741, %v742
      %v744 = vrot.slane %v743, 2
      %v745 = vmax.f32 %v743, %v744
      %v746 = vrot.slane %v745, 1
      %v747 = vmax.f32 %v745, %v746
      %v748 = vmax.f32 %v554, %v564
      %v749 = vmax.f32 %v558, %v568
      %v750 = vmax.f32 %v748, %v574
      %v751 = vmax.f32 %v749, %v578
      %v752 = vmax.f32 %v750, %v584
      %v753 = vmax.f32 %v751, %v588
      %v754 = vmax.f32 %v752, %v594
      %v755 = vmax.f32 %v753, %v598
      %v756 = vmax.f32 %v754, %v604
      %v757 = vmax.f32 %v755, %v608
      %v758 = vmax.f32 %v756, %v614
      %v759 = vmax.f32 %v757, %v618
      %v760 = vmax.f32 %v758, %v624
      %v761 = vmax.f32 %v759, %v628
      %v762 = vmax.f32 %v760, %v634
      %v763 = vmax.f32 %v761, %v638
      %v764 = vmax.f32 %v762, %v644
      %v765 = vmax.f32 %v763, %v648
      %v766 = vmax.f32 %v764, %v654
      %v767 = vmax.f32 %v765, %v658
      %v768 = vmax.f32 %v766, %v664
      %v769 = vmax.f32 %v767, %v668
      %v770 = vmax.f32 %v768, %v674
      %v771 = vmax.f32 %v769, %v678
      %v772 = vmax.f32 %v770, %v684
      %v773 = vmax.f32 %v771, %v688
      %v774 = vmax.f32 %v772, %v694
      %v775 = vmax.f32 %v773, %v698
      %v776 = vmax.f32 %v774, %v704
      %v777 = vmax.f32 %v775, %v708
      %v778 = vmax.f32 %v776, %v777
      %v779 = vrot.slane %v778, 4
      %v780 = vmax.f32 %v778, %v779
      %v781 = vrot.slane %v780, 2
      %v782 = vmax.f32 %v780, %v781
      %v783 = vrot.slane %v782, 1
      %v784 = vmax.f32 %v782, %v783
      %v787 = vcombine.low %v747, %v784
      %v789 = vunpack.c.l.s4 1966171168
      %v790 = vunpack.c.0.s8 %v789
      %v791 = vlaneseq
      %v792 = vshrl.u32 %v791, 7
      %v793 = vsub.s32 %v790, %v792
      %v794 = vrot.slane %v787, %v793
      %v796 = vunpack.c.l.s4 1966171168
      %v797 = vunpack.c.0.s8 %v796
      %v798 = vlaneseq
      %v799 = vshrl.u32 %v798, 7
      %v800 = vsub.s32 %v797, %v799
      %v801 = vrot.slane %v794, %v800
      %v803 = vmax.f32 %v710, %v801
      %v804 = vsub.f32 %v710, %v803
      %v805 = vmul.f32 %v804, 1.442695
      %v806 = vpow.pop %v805
      %v808 = vlaneseq
      %v809 = vshrl.u32 %v808, 7
      %v810 = vsub.s32 0, %v809
      %v811 = vrot.slane %v803, %v810
      %v812 = vlaneseq
      %v813 = vshrl.u32 %v812, 7
      %v814 = vsub.s32 1, %v813
      %v815 = vrot.slane %v803, %v814
      %v818 = vsub.f32 %v552, %v811
      %v819 = vsub.f32 %v554, %v815
      %v820 = vsub.f32 %v556, %v811
      %v821 = vsub.f32 %v558, %v815
      %v822 = vsub.f32 %v562, %v811
      %v823 = vsub.f32 %v564, %v815
      %v824 = vsub.f32 %v566, %v811
      %v825 = vsub.f32 %v568, %v815
      %v826 = vsub.f32 %v572, %v811
      %v827 = vsub.f32 %v574, %v815
      %v828 = vsub.f32 %v576, %v811
      %v829 = vsub.f32 %v578, %v815
      %v830 = vsub.f32 %v582, %v811
      %v831 = vsub.f32 %v584, %v815
      %v832 = vsub.f32 %v586, %v811
      %v833 = vsub.f32 %v588, %v815
      %v834 = vsub.f32 %v592, %v811
      %v835 = vsub.f32 %v594, %v815
      %v836 = vsub.f32 %v596, %v811
      %v837 = vsub.f32 %v598, %v815
      %v838 = vsub.f32 %v602, %v811
      %v839 = vsub.f32 %v604, %v815
      %v840 = vsub.f32 %v606, %v811
      %v841 = vsub.f32 %v608, %v815
      %v842 = vsub.f32 %v612, %v811
      %v843 = vsub.f32 %v614, %v815
      %v844 = vsub.f32 %v616, %v811
      %v845 = vsub.f32 %v618, %v815
      %v846 = vsub.f32 %v622, %v811
      %v847 = vsub.f32 %v624, %v815
      %v848 = vsub.f32 %v626, %v811
      %v849 = vsub.f32 %v628, %v815
      %v850 = vsub.f32 %v632, %v811
      %v851 = vsub.f32 %v634, %v815
      %v852 = vsub.f32 %v636, %v811
      %v853 = vsub.f32 %v638, %v815
      %v854 = vsub.f32 %v642, %v811
      %v855 = vsub.f32 %v644, %v815
      %v856 = vsub.f32 %v646, %v811
      %v857 = vsub.f32 %v648, %v815
      %v858 = vsub.f32 %v652, %v811
      %v859 = vsub.f32 %v654, %v815
      %v860 = vsub.f32 %v656, %v811
      %v861 = vsub.f32 %v658, %v815
      %v862 = vsub.f32 %v662, %v811
      %v863 = vsub.f32 %v664, %v815
      %v864 = vsub.f32 %v666, %v811
      %v865 = vsub.f32 %v668, %v815
      %v866 = vsub.f32 %v672, %v811
      %v867 = vsub.f32 %v674, %v815
      %v868 = vsub.f32 %v676, %v811
      %v869 = vsub.f32 %v678, %v815
      %v870 = vsub.f32 %v682, %v811
      %v871 = vsub.f32 %v684, %v815
      %v872 = vsub.f32 %v686, %v811
      %v873 = vsub.f32 %v688, %v815
      %v874 = vsub.f32 %v692, %v811
      %v875 = vsub.f32 %v694, %v815
      %v876 = vsub.f32 %v696, %v811
      %v877 = vsub.f32 %v698, %v815
      %v878 = vsub.f32 %v702, %v811
      %v879 = vsub.f32 %v704, %v815
      %v880 = vsub.f32 %v706, %v811
      %v881 = vsub.f32 %v708, %v815
      %v882 = vmul.f32 %v818, 1.442695
      %v883 = vpow.pop %v882
      %v884 = vmul.f32 %v819, 1.442695
      %v885 = vpow.pop %v884
      %v886 = vmul.f32 %v820, 1.442695
      %v887 = vpow.pop %v886
      %v888 = vmul.f32 %v821, 1.442695
      %v889 = vpow.pop %v888
      %v890 = vmul.f32 %v822, 1.442695
      %v891 = vpow.pop %v890
      %v892 = vmul.f32 %v823, 1.442695
      %v893 = vpow.pop %v892
      %v894 = vmul.f32 %v824, 1.442695
      %v895 = vpow.pop %v894
      %v896 = vmul.f32 %v825, 1.442695
      %v897 = vpow.pop %v896
      %v898 = vmul.f32 %v826, 1.442695
      %v899 = vpow.pop %v898
      %v900 = vmul.f32 %v827, 1.442695
      %v901 = vpow.pop %v900
      %v902 = vmul.f32 %v828, 1.442695
      %v903 = vpow.pop %v902
      %v904 = vmul.f32 %v829, 1.442695
      %v905 = vpow.pop %v904
      %v906 = vmul.f32 %v830, 1.442695
      %v907 = vpow.pop %v906
      %v908 = vmul.f32 %v831, 1.442695
      %v909 = vpow.pop %v908
      %v910 = vmul.f32 %v832, 1.442695
      %v911 = vpow.pop %v910
      %v912 = vmul.f32 %v833, 1.442695
      %v913 = vpow.pop %v912
      %v914 = vmul.f32 %v834, 1.442695
      %v915 = vpow.pop %v914
      %v916 = vmul.f32 %v835, 1.442695
      %v917 = vpow.pop %v916
      %v918 = vmul.f32 %v836, 1.442695
      %v919 = vpow.pop %v918
      %v920 = vmul.f32 %v837, 1.442695
      %v921 = vpow.pop %v920
      %v922 = vmul.f32 %v838, 1.442695
      %v923 = vpow.pop %v922
      %v924 = vmul.f32 %v839, 1.442695
      %v925 = vpow.pop %v924
      %v926 = vmul.f32 %v840, 1.442695
      %v927 = vpow.pop %v926
      %v928 = vmul.f32 %v841, 1.442695
      %v929 = vpow.pop %v928
      %v930 = vmul.f32 %v842, 1.442695
      %v931 = vpow.pop %v930
      %v932 = vmul.f32 %v843, 1.442695
      %v933 = vpow.pop %v932
      %v934 = vmul.f32 %v844, 1.442695
      %v935 = vpow.pop %v934
      %v936 = vmul.f32 %v845, 1.442695
      %v937 = vpow.pop %v936
      %v938 = vmul.f32 %v846, 1.442695
      %v939 = vpow.pop %v938
      %v940 = vmul.f32 %v847, 1.442695
      %v941 = vpow.pop %v940
      %v942 = vmul.f32 %v848, 1.442695
      %v943 = vpow.pop %v942
      %v944 = vmul.f32 %v849, 1.442695
      %v945 = vpow.pop %v944
      %v946 = vmul.f32 %v850, 1.442695
      %v947 = vpow.pop %v946
      %v948 = vmul.f32 %v851, 1.442695
      %v949 = vpow.pop %v948
      %v950 = vmul.f32 %v852, 1.442695
      %v951 = vpow.pop %v950
      %v952 = vmul.f32 %v853, 1.442695
      %v953 = vpow.pop %v952
      %v954 = vmul.f32 %v854, 1.442695
      %v955 = vpow.pop %v954
      %v956 = vmul.f32 %v855, 1.442695
      %v957 = vpow.pop %v956
      %v958 = vmul.f32 %v856, 1.442695
      %v959 = vpow.pop %v958
      %v960 = vmul.f32 %v857, 1.442695
      %v961 = vpow.pop %v960
      %v962 = vmul.f32 %v858, 1.442695
      %v963 = vpow.pop %v962
      %v964 = vmul.f32 %v859, 1.442695
      %v965 = vpow.pop %v964
      %v966 = vmul.f32 %v860, 1.442695
      %v967 = vpow.pop %v966
      %v968 = vmul.f32 %v861, 1.442695
      %v969 = vpow.pop %v968
      %v970 = vmul.f32 %v862, 1.442695
      %v971 = vpow.pop %v970
      %v972 = vmul.f32 %v863, 1.442695
      %v973 = vpow.pop %v972
      %v974 = vmul.f32 %v864, 1.442695
      %v975 = vpow.pop %v974
      %v976 = vmul.f32 %v865, 1.442695
      %v977 = vpow.pop %v976
      %v978 = vmul.f32 %v866, 1.442695
      %v979 = vpow.pop %v978
      %v980 = vmul.f32 %v867, 1.442695
      %v981 = vpow.pop %v980
      %v982 = vmul.f32 %v868, 1.442695
      %v983 = vpow.pop %v982
      %v984 = vmul.f32 %v869, 1.442695
      %v985 = vpow.pop %v984
      %v986 = vmul.f32 %v870, 1.442695
      %v987 = vpow.pop %v986
      %v988 = vmul.f32 %v871, 1.442695
      %v989 = vpow.pop %v988
      %v990 = vmul.f32 %v872, 1.442695
      %v991 = vpow.pop %v990
      %v992 = vmul.f32 %v873, 1.442695
      %v993 = vpow.pop %v992
      %v994 = vmul.f32 %v874, 1.442695
      %v995 = vpow.pop %v994
      %v996 = vmul.f32 %v875, 1.442695
      %v997 = vpow.pop %v996
      %v998 = vmul.f32 %v876, 1.442695
      %v999 = vpow.pop %v998
      %v1000 = vmul.f32 %v877, 1.442695
      %v1001 = vpow.pop %v1000
      %v1002 = vmul.f32 %v878, 1.442695
      %v1003 = vpow.pop %v1002
      %v1004 = vmul.f32 %v879, 1.442695
      %v1005 = vpow.pop %v1004
      %v1006 = vmul.f32 %v880, 1.442695
      %v1007 = vpow.pop %v1006
      %v1008 = vmul.f32 %v881, 1.442695
      %v1009 = vpow.pop %v1008
      %v1010 = vld [vmem:[#allocation3] sm:$0x3]
      %v1011 = vmul.f32 %v806, %v1010
      %v1012 = vadd.f32 %v883, %v887
      %v1013 = vadd.f32 %v1012, %v891
      %v1014 = vadd.f32 %v1013, %v895
      %v1015 = vadd.f32 %v1014, %v899
      %v1016 = vadd.f32 %v1015, %v903
      %v1017 = vadd.f32 %v1016, %v907
      %v1018 = vadd.f32 %v1017, %v911
      %v1019 = vadd.f32 %v1018, %v915
      %v1020 = vadd.f32 %v1019, %v919
      %v1021 = vadd.f32 %v1020, %v923
      %v1022 = vadd.f32 %v1021, %v927
      %v1023 = vadd.f32 %v1022, %v931
      %v1024 = vadd.f32 %v1023, %v935
      %v1025 = vadd.f32 %v1024, %v939
      %v1026 = vadd.f32 %v1025, %v943
      %v1027 = vadd.f32 %v1026, %v947
      %v1028 = vadd.f32 %v1027, %v951
      %v1029 = vadd.f32 %v1028, %v955
      %v1030 = vadd.f32 %v1029, %v959
      %v1031 = vadd.f32 %v1030, %v963
      %v1032 = vadd.f32 %v1031, %v967
      %v1033 = vadd.f32 %v1032, %v971
      %v1034 = vadd.f32 %v1033, %v975
      %v1035 = vadd.f32 %v1034, %v979
      %v1036 = vadd.f32 %v1035, %v983
      %v1037 = vadd.f32 %v1036, %v987
      %v1038 = vadd.f32 %v1037, %v991
      %v1039 = vadd.f32 %v1038, %v995
      %v1040 = vadd.f32 %v1039, %v999
      %v1041 = vadd.f32 %v1040, %v1003
      %v1042 = vadd.f32 %v1041, %v1007
      %v1043 = vrot.slane %v1042, 4
      %v1044 = vadd.f32 %v1042, %v1043
      %v1045 = vrot.slane %v1044, 2
      %v1046 = vadd.f32 %v1044, %v1045
      %v1047 = vrot.slane %v1046, 1
      %v1048 = vadd.f32 %v1046, %v1047
      %v1049 = vadd.f32 %v885, %v889
      %v1050 = vadd.f32 %v1049, %v893
      %v1051 = vadd.f32 %v1050, %v897
      %v1052 = vadd.f32 %v1051, %v901
      %v1053 = vadd.f32 %v1052, %v905
      %v1054 = vadd.f32 %v1053, %v909
      %v1055 = vadd.f32 %v1054, %v913
      %v1056 = vadd.f32 %v1055, %v917
      %v1057 = vadd.f32 %v1056, %v921
      %v1058 = vadd.f32 %v1057, %v925
      %v1059 = vadd.f32 %v1058, %v929
      %v1060 = vadd.f32 %v1059, %v933
      %v1061 = vadd.f32 %v1060, %v937
      %v1062 = vadd.f32 %v1061, %v941
      %v1063 = vadd.f32 %v1062, %v945
      %v1064 = vadd.f32 %v1063, %v949
      %v1065 = vadd.f32 %v1064, %v953
      %v1066 = vadd.f32 %v1065, %v957
      %v1067 = vadd.f32 %v1066, %v961
      %v1068 = vadd.f32 %v1067, %v965
      %v1069 = vadd.f32 %v1068, %v969
      %v1070 = vadd.f32 %v1069, %v973
      %v1071 = vadd.f32 %v1070, %v977
      %v1072 = vadd.f32 %v1071, %v981
      %v1073 = vadd.f32 %v1072, %v985
      %v1074 = vadd.f32 %v1073, %v989
      %v1075 = vadd.f32 %v1074, %v993
      %v1076 = vadd.f32 %v1075, %v997
      %v1077 = vadd.f32 %v1076, %v1001
      %v1078 = vadd.f32 %v1077, %v1005
      %v1079 = vadd.f32 %v1078, %v1009
      %v1080 = vrot.slane %v1079, 4
      %v1081 = vadd.f32 %v1079, %v1080
      %v1082 = vrot.slane %v1081, 2
      %v1083 = vadd.f32 %v1081, %v1082
      %v1084 = vrot.slane %v1083, 1
      %v1085 = vadd.f32 %v1083, %v1084
      %v1088 = vcombine.low %v1048, %v1085
      %v1090 = vunpack.c.l.s4 1966171168
      %v1091 = vunpack.c.0.s8 %v1090
      %v1092 = vlaneseq
      %v1093 = vshrl.u32 %v1092, 7
      %v1094 = vsub.s32 %v1091, %v1093
      %v1095 = vrot.slane %v1088, %v1094
      %v1097 = vunpack.c.l.s4 1966171168
      %v1098 = vunpack.c.0.s8 %v1097
      %v1099 = vlaneseq
      %v1100 = vshrl.u32 %v1099, 7
      %v1101 = vsub.s32 %v1098, %v1100
      %v1102 = vrot.slane %v1095, %v1101
      %v1104 = vadd.f32 %v1011, %v1102
      %v1105 = vlaneseq
      %vm1106 = vcmp.ge.s32.totalorder %v1105, 0
      %vm1107 = vcmp.lt.s32.totalorder %v1105, 256
      %vm1108 = vmand %vm1106, %vm1107
      %1109 = vst.msk [vmem:[#allocation3] sm:$0x3] %vm1108, %v1104
      %v1110 = vld [vmem:[#allocation4] sm:$0xff]
      %v1111 = vld [vmem:[#allocation4 + $0x8] sm:$0xff]
      %v1112 = vld [vmem:[#allocation4 + $0x10] sm:$0xff]
      %v1113 = vld [vmem:[#allocation4 + $0x18] sm:$0xff]
      %v1114 = vld [vmem:[#allocation4 + $0x20] sm:$0xff]
      %v1115 = vld [vmem:[#allocation4 + $0x28] sm:$0xff]
      %v1116 = vld [vmem:[#allocation4 + $0x30] sm:$0xff]
      %v1117 = vld [vmem:[#allocation4 + $0x38] sm:$0xff]
      %v1118 = vld [vmem:[#allocation4 + $0x40] sm:$0xff]
      %v1119 = vld [vmem:[#allocation4 + $0x48] sm:$0xff]
      %v1120 = vld [vmem:[#allocation4 + $0x50] sm:$0xff]
      %v1121 = vld [vmem:[#allocation4 + $0x58] sm:$0xff]
      %v1122 = vld [vmem:[#allocation4 + $0x60] sm:$0xff]
      %v1123 = vld [vmem:[#allocation4 + $0x68] sm:$0xff]
      %v1124 = vld [vmem:[#allocation4 + $0x70] sm:$0xff]
      %v1125 = vld [vmem:[#allocation4 + $0x78] sm:$0xff]
      %v1127 = vlaneseq
      %v1128 = vshrl.u32 %v1127, 7
      %v1129 = vsub.s32 0, %v1128
      %v1130 = vrot.slane %v806, %v1129
      %v1131 = vlaneseq
      %v1132 = vshrl.u32 %v1131, 7
      %v1133 = vsub.s32 1, %v1132
      %v1134 = vrot.slane %v806, %v1133
      %v1137 = vmul.f32 %v1130, %v1110
      %v1138 = vmul.f32 %v1134, %v1111
      %v1139 = vmul.f32 %v1130, %v1112
      %v1140 = vmul.f32 %v1134, %v1113
      %v1141 = vmul.f32 %v1130, %v1114
      %v1142 = vmul.f32 %v1134, %v1115
      %v1143 = vmul.f32 %v1130, %v1116
      %v1144 = vmul.f32 %v1134, %v1117
      %v1145 = vmul.f32 %v1130, %v1118
      %v1146 = vmul.f32 %v1134, %v1119
      %v1147 = vmul.f32 %v1130, %v1120
      %v1148 = vmul.f32 %v1134, %v1121
      %v1149 = vmul.f32 %v1130, %v1122
      %v1150 = vmul.f32 %v1134, %v1123
      %v1151 = vmul.f32 %v1130, %v1124
      %v1152 = vmul.f32 %v1134, %v1125
      %v1153 = vpack.c.bf16 %v887, %v883
      %v1154 = vpack.c.bf16 %v889, %v885
      %v1155 = vpack.c.bf16 %v895, %v891
      %v1156 = vpack.c.bf16 %v897, %v893
      %v1157 = vpack.c.bf16 %v903, %v899
      %v1158 = vpack.c.bf16 %v905, %v901
      %v1159 = vpack.c.bf16 %v911, %v907
      %v1160 = vpack.c.bf16 %v913, %v909
      %v1161 = vpack.c.bf16 %v919, %v915
      %v1162 = vpack.c.bf16 %v921, %v917
      %v1163 = vpack.c.bf16 %v927, %v923
      %v1164 = vpack.c.bf16 %v929, %v925
      %v1165 = vpack.c.bf16 %v935, %v931
      %v1166 = vpack.c.bf16 %v937, %v933
      %v1167 = vpack.c.bf16 %v943, %v939
      %v1168 = vpack.c.bf16 %v945, %v941
      %v1169 = vpack.c.bf16 %v951, %v947
      %v1170 = vpack.c.bf16 %v953, %v949
      %v1171 = vpack.c.bf16 %v959, %v955
      %v1172 = vpack.c.bf16 %v961, %v957
      %v1173 = vpack.c.bf16 %v967, %v963
      %v1174 = vpack.c.bf16 %v969, %v965
      %v1175 = vpack.c.bf16 %v975, %v971
      %v1176 = vpack.c.bf16 %v977, %v973
      %v1177 = vpack.c.bf16 %v983, %v979
      %v1178 = vpack.c.bf16 %v985, %v981
      %v1179 = vpack.c.bf16 %v991, %v987
      %v1180 = vpack.c.bf16 %v993, %v989
      %v1181 = vpack.c.bf16 %v999, %v995
      %v1182 = vpack.c.bf16 %v1001, %v997
      %v1183 = vpack.c.bf16 %v1007, %v1003
      %v1184 = vpack.c.bf16 %v1009, %v1005
      %v1193 = vunpack.c.l.b16 %v409
      %v1194 = vunpack.c.h.b16 %v409
      %v1195 = vunpack.c.l.b16 %v410
      %v1196 = vunpack.c.h.b16 %v410
      %v1197 = vunpack.c.l.b16 %v411
      %v1198 = vunpack.c.h.b16 %v411
      %v1199 = vunpack.c.l.b16 %v412
      %v1200 = vunpack.c.h.b16 %v412
      %v1201 = vunpack.c.l.b16 %v413
      %v1202 = vunpack.c.h.b16 %v413
      %v1203 = vunpack.c.l.b16 %v414
      %v1204 = vunpack.c.h.b16 %v414
      %v1205 = vunpack.c.l.b16 %v415
      %v1206 = vunpack.c.h.b16 %v415
      %v1207 = vunpack.c.l.b16 %v416
      %v1208 = vunpack.c.h.b16 %v416
      %v1209 = vpack.c.b16 %v1195, %v1193
      %v1210 = vpack.c.b16 %v1196, %v1194
      %v1211 = vpack.c.b16 %v1199, %v1197
      %v1212 = vpack.c.b16 %v1200, %v1198
      %v1213 = vpack.c.b16 %v1203, %v1201
      %v1214 = vpack.c.b16 %v1204, %v1202
      %v1215 = vpack.c.b16 %v1207, %v1205
      %v1216 = vpack.c.b16 %v1208, %v1206
      %1225 = vmatprep.subr.bf16.mxu0 %v1168
      %1226 = vmatpush1.bf16.msra.mxu0 %v1167
      %1227 = vmatprep.subr.bf16.mxu0 %v1166
      %1228 = vmatpush1.bf16.msra.mxu0 %v1165
      %1229 = vmatprep.subr.bf16.mxu0 %v1164
      %1230 = vmatpush1.bf16.msra.mxu0 %v1163
      %1231 = vmatprep.subr.bf16.mxu0 %v1162
      %1232 = vmatpush1.bf16.msra.mxu0 %v1161
      %1233 = vmatprep.subr.bf16.mxu0 %v1160
      %1234 = vmatpush1.bf16.msra.mxu0 %v1159
      %1235 = vmatprep.subr.bf16.mxu0 %v1158
      %1236 = vmatpush1.bf16.msra.mxu0 %v1157
      %1237 = vmatprep.subr.bf16.mxu0 %v1156
      %1238 = vmatpush1.bf16.msra.mxu0 %v1155
      %1239 = vmatprep.subr.bf16.mxu0 %v1154
      %1240 = vmatpush1.bf16.msra.mxu0 %v1153
      %1241 = vmatprep.subr.bf16.mxu0 %v1184
      %1242 = vmatpush2.bf16.msra.mxu0 %v1183
      %1243 = vmatprep.subr.bf16.mxu0 %v1182
      %1244 = vmatpush2.bf16.msra.mxu0 %v1181
      %1245 = vmatprep.subr.bf16.mxu0 %v1180
      %1246 = vmatpush2.bf16.msra.mxu0 %v1179
      %1247 = vmatprep.subr.bf16.mxu0 %v1178
      %1248 = vmatpush2.bf16.msra.mxu0 %v1177
      %1249 = vmatprep.subr.bf16.mxu0 %v1176
      %1250 = vmatpush2.bf16.msra.mxu0 %v1175
      %1251 = vmatprep.subr.bf16.mxu0 %v1174
      %1252 = vmatpush2.bf16.msra.mxu0 %v1173
      %1253 = vmatprep.subr.bf16.mxu0 %v1172
      %1254 = vmatpush2.bf16.msra.mxu0 %v1171
      %1255 = vmatprep.subr.bf16.mxu0 %v1170
      %1256 = vmatpush2.bf16.msra.mxu0 %v1169
      %1257 = vmatprep.mubr.bf16.mxu0 %v1210
      %1258 = vmatmul.mubr.bf16.gmra.mxu0 %v1209
      %v1259 = vpop.f32.mrf.mxu0
      %v1260 = vadd.f32 0.0, %v1259
      %v1261 = vpop.f32.mrf.mxu0
      %v1262 = vadd.f32 0.0, %v1261
      %v1263 = vpop.f32.mrf.mxu0
      %v1264 = vadd.f32 0.0, %v1263
      %v1265 = vpop.f32.mrf.mxu0
      %v1266 = vadd.f32 0.0, %v1265
      %1267 = vmatprep.mubr.bf16.mxu0 %v1212
      %1268 = vmatmul.mubr.bf16.gmra.mxu0 %v1211
      %v1269 = vpop.f32.mrf.mxu0
      %v1270 = vadd.f32 0.0, %v1269
      %v1271 = vpop.f32.mrf.mxu0
      %v1272 = vadd.f32 0.0, %v1271
      %v1273 = vpop.f32.mrf.mxu0
      %v1274 = vadd.f32 0.0, %v1273
      %v1275 = vpop.f32.mrf.mxu0
      %v1276 = vadd.f32 0.0, %v1275
      %1277 = vmatprep.mubr.bf16.mxu0 %v1214
      %1278 = vmatmul.mubr.bf16.gmra.mxu0 %v1213
      %v1279 = vpop.f32.mrf.mxu0
      %v1280 = vadd.f32 0.0, %v1279
      %v1281 = vpop.f32.mrf.mxu0
      %v1282 = vadd.f32 0.0, %v1281
      %v1283 = vpop.f32.mrf.mxu0
      %v1284 = vadd.f32 0.0, %v1283
      %v1285 = vpop.f32.mrf.mxu0
      %v1286 = vadd.f32 0.0, %v1285
      %1287 = vmatprep.mubr.bf16.mxu0 %v1216
      %1288 = vmatmul.mubr.bf16.gmra.mxu0 %v1215
      %v1289 = vpop.f32.mrf.mxu0
      %v1290 = vadd.f32 0.0, %v1289
      %v1291 = vpop.f32.mrf.mxu0
      %v1292 = vadd.f32 0.0, %v1291
      %v1293 = vpop.f32.mrf.mxu0
      %v1294 = vadd.f32 0.0, %v1293
      %v1295 = vpop.f32.mrf.mxu0
      %v1296 = vadd.f32 0.0, %v1295
      %1297 = vdwg.mxu0
      %v1298 = vadd.f32 %v1137, %v1260
      %v1299 = vadd.f32 %v1138, %v1262
      %v1300 = vadd.f32 %v1139, %v1264
      %v1301 = vadd.f32 %v1140, %v1266
      %v1302 = vadd.f32 %v1141, %v1270
      %v1303 = vadd.f32 %v1142, %v1272
      %v1304 = vadd.f32 %v1143, %v1274
      %v1305 = vadd.f32 %v1144, %v1276
      %v1306 = vadd.f32 %v1145, %v1280
      %v1307 = vadd.f32 %v1146, %v1282
      %v1308 = vadd.f32 %v1147, %v1284
      %v1309 = vadd.f32 %v1148, %v1286
      %v1310 = vadd.f32 %v1149, %v1290
      %v1311 = vadd.f32 %v1150, %v1292
      %v1312 = vadd.f32 %v1151, %v1294
      %v1313 = vadd.f32 %v1152, %v1296
      %1314 = vst [vmem:[#allocation4] sm:$0xff] %v1298
      %1315 = vst [vmem:[#allocation4 + $0x8] sm:$0xff] %v1299
      %1316 = vst [vmem:[#allocation4 + $0x10] sm:$0xff] %v1300
      %1317 = vst [vmem:[#allocation4 + $0x18] sm:$0xff] %v1301
      %1318 = vst [vmem:[#allocation4 + $0x20] sm:$0xff] %v1302
      %1319 = vst [vmem:[#allocation4 + $0x28] sm:$0xff] %v1303
      %1320 = vst [vmem:[#allocation4 + $0x30] sm:$0xff] %v1304
      %1321 = vst [vmem:[#allocation4 + $0x38] sm:$0xff] %v1305
      %1322 = vst [vmem:[#allocation4 + $0x40] sm:$0xff] %v1306
      %1323 = vst [vmem:[#allocation4 + $0x48] sm:$0xff] %v1307
      %1324 = vst [vmem:[#allocation4 + $0x50] sm:$0xff] %v1308
      %1325 = vst [vmem:[#allocation4 + $0x58] sm:$0xff] %v1309
      %1326 = vst [vmem:[#allocation4 + $0x60] sm:$0xff] %v1310
      %1327 = vst [vmem:[#allocation4 + $0x68] sm:$0xff] %v1311
      %1328 = vst [vmem:[#allocation4 + $0x70] sm:$0xff] %v1312
      %1329 = vst [vmem:[#allocation4 + $0x78] sm:$0xff] %v1313
      %1330 = vst.msk [vmem:[#allocation2] sm:$0x3] %vm1108, %v803
      // Predicated region
      $region45: #{attention_layer.3} parent=39 // pred_check
        %p1331 = pneg %p381
      $region46: #{attention_layer.3} parent=39 // pred_check_branch
        %1333 = sbr.rel (%p1331) target = $region48
      $region47: #{attention_layer.3} parent=39 // pred_region
        %v1334 = vld [vmem:[#allocation3] sm:$0x3]
        %v1335 = vrcp.pop %v1334
        %v1336 = vld [vmem:[#allocation4] sm:$0xff]
        %v1337 = vld [vmem:[#allocation4 + $0x8] sm:$0xff]
        %v1338 = vld [vmem:[#allocation4 + $0x10] sm:$0xff]
        %v1339 = vld [vmem:[#allocation4 + $0x18] sm:$0xff]
        %v1340 = vld [vmem:[#allocation4 + $0x20] sm:$0xff]
        %v1341 = vld [vmem:[#allocation4 + $0x28] sm:$0xff]
        %v1342 = vld [vmem:[#allocation4 + $0x30] sm:$0xff]
        %v1343 = vld [vmem:[#allocation4 + $0x38] sm:$0xff]
        %v1344 = vld [vmem:[#allocation4 + $0x40] sm:$0xff]
        %v1345 = vld [vmem:[#allocation4 + $0x48] sm:$0xff]
        %v1346 = vld [vmem:[#allocation4 + $0x50] sm:$0xff]
        %v1347 = vld [vmem:[#allocation4 + $0x58] sm:$0xff]
        %v1348 = vld [vmem:[#allocation4 + $0x60] sm:$0xff]
        %v1349 = vld [vmem:[#allocation4 + $0x68] sm:$0xff]
        %v1350 = vld [vmem:[#allocation4 + $0x70] sm:$0xff]
        %v1351 = vld [vmem:[#allocation4 + $0x78] sm:$0xff]
        %v1353 = vlaneseq
        %v1354 = vshrl.u32 %v1353, 7
        %v1355 = vsub.s32 0, %v1354
        %v1356 = vrot.slane %v1335, %v1355
        %v1357 = vlaneseq
        %v1358 = vshrl.u32 %v1357, 7
        %v1359 = vsub.s32 1, %v1358
        %v1360 = vrot.slane %v1335, %v1359
        %v1363 = vmul.f32 %v1336, %v1356
        %v1364 = vmul.f32 %v1337, %v1360
        %v1365 = vmul.f32 %v1338, %v1356
        %v1366 = vmul.f32 %v1339, %v1360
        %v1367 = vmul.f32 %v1340, %v1356
        %v1368 = vmul.f32 %v1341, %v1360
        %v1369 = vmul.f32 %v1342, %v1356
        %v1370 = vmul.f32 %v1343, %v1360
        %v1371 = vmul.f32 %v1344, %v1356
        %v1372 = vmul.f32 %v1345, %v1360
        %v1373 = vmul.f32 %v1346, %v1356
        %v1374 = vmul.f32 %v1347, %v1360
        %v1375 = vmul.f32 %v1348, %v1356
        %v1376 = vmul.f32 %v1349, %v1360
        %v1377 = vmul.f32 %v1350, %v1356
        %v1378 = vmul.f32 %v1351, %v1360
        %s1379 = sld [smem:[#allocation5]]
        %v1380 = vstv %s1379
        %v1381 = vmul.f32 %v1380, %v1363
        %v1382 = vmul.f32 %v1380, %v1364
        %v1383 = vmul.f32 %v1380, %v1365
        %v1384 = vmul.f32 %v1380, %v1366
        %v1385 = vmul.f32 %v1380, %v1367
        %v1386 = vmul.f32 %v1380, %v1368
        %v1387 = vmul.f32 %v1380, %v1369
        %v1388 = vmul.f32 %v1380, %v1370
        %v1389 = vmul.f32 %v1380, %v1371
        %v1390 = vmul.f32 %v1380, %v1372
        %v1391 = vmul.f32 %v1380, %v1373
        %v1392 = vmul.f32 %v1380, %v1374
        %v1393 = vmul.f32 %v1380, %v1375
        %v1394 = vmul.f32 %v1380, %v1376
        %v1395 = vmul.f32 %v1380, %v1377
        %v1396 = vmul.f32 %v1380, %v1378
        %v1397 = vld [vmem:[%s368] sm:$0xff]
        %v1398 = vld [vmem:[%s368 + $0x8] sm:$0xff]
        %v1399 = vld [vmem:[%s368 + $0x10] sm:$0xff]
        %v1400 = vld [vmem:[%s368 + $0x18] sm:$0xff]
        %v1401 = vld [vmem:[%s368 + $0x20] sm:$0xff]
        %v1402 = vld [vmem:[%s368 + $0x28] sm:$0xff]
        %v1403 = vld [vmem:[%s368 + $0x30] sm:$0xff]
        %v1404 = vld [vmem:[%s368 + $0x38] sm:$0xff]
        %v1405 = vld [vmem:[%s368 + $0x40] sm:$0xff]
        %v1406 = vld [vmem:[%s368 + $0x48] sm:$0xff]
        %v1407 = vld [vmem:[%s368 + $0x50] sm:$0xff]
        %v1408 = vld [vmem:[%s368 + $0x58] sm:$0xff]
        %v1409 = vld [vmem:[%s368 + $0x60] sm:$0xff]
        %v1410 = vld [vmem:[%s368 + $0x68] sm:$0xff]
        %v1411 = vld [vmem:[%s368 + $0x70] sm:$0xff]
        %v1412 = vld [vmem:[%s368 + $0x78] sm:$0xff]
        %v1413 = vadd.f32 %v1381, %v1397
        %v1414 = vadd.f32 %v1382, %v1398
        %v1415 = vadd.f32 %v1383, %v1399
        %v1416 = vadd.f32 %v1384, %v1400
        %v1417 = vadd.f32 %v1385, %v1401
        %v1418 = vadd.f32 %v1386, %v1402
        %v1419 = vadd.f32 %v1387, %v1403
        %v1420 = vadd.f32 %v1388, %v1404
        %v1421 = vadd.f32 %v1389, %v1405
        %v1422 = vadd.f32 %v1390, %v1406
        %v1423 = vadd.f32 %v1391, %v1407
        %v1424 = vadd.f32 %v1392, %v1408
        %v1425 = vadd.f32 %v1393, %v1409
        %v1426 = vadd.f32 %v1394, %v1410
        %v1427 = vadd.f32 %v1395, %v1411
        %v1428 = vadd.f32 %v1396, %v1412
        %1429 = vst [vmem:[%s378] sm:$0xff] %v1413
        %1430 = vst [vmem:[%s378 + $0x8] sm:$0xff] %v1414
        %1431 = vst [vmem:[%s378 + $0x10] sm:$0xff] %v1415
        %1432 = vst [vmem:[%s378 + $0x18] sm:$0xff] %v1416
        %1433 = vst [vmem:[%s378 + $0x20] sm:$0xff] %v1417
        %1434 = vst [vmem:[%s378 + $0x28] sm:$0xff] %v1418
        %1435 = vst [vmem:[%s378 + $0x30] sm:$0xff] %v1419
        %1436 = vst [vmem:[%s378 + $0x38] sm:$0xff] %v1420
        %1437 = vst [vmem:[%s378 + $0x40] sm:$0xff] %v1421
        %1438 = vst [vmem:[%s378 + $0x48] sm:$0xff] %v1422
        %1439 = vst [vmem:[%s378 + $0x50] sm:$0xff] %v1423
        %1440 = vst [vmem:[%s378 + $0x58] sm:$0xff] %v1424
        %1441 = vst [vmem:[%s378 + $0x60] sm:$0xff] %v1425
        %1442 = vst [vmem:[%s378 + $0x68] sm:$0xff] %v1426
        %1443 = vst [vmem:[%s378 + $0x70] sm:$0xff] %v1427
        %1444 = vst [vmem:[%s378 + $0x78] sm:$0xff] %v1428
      $region48: #{attention_layer.3} parent=39 // pred_fallthru
        _
      %s1445 = smul.u32 2, %s23
      %p1446 = scmp.lt.s32.totalorder %s22, 1
      %s1447 = scalar_select %p1446, %s22, 1
      %p1448 = scmp.lt.s32.totalorder %s1445, 1
      %s1449 = scalar_select %p1448, %s1445, 1
      %s1450 = smul.addr %s1447, 16
      %s1451 = sadd.s32 %s1449, %s1450
      %s1452 = smul.addr %s1451, 8
      %s1453 = scalar_lea.vmem %s5, %s1452
      // Predicated region
      $region49: #{attention_layer.3} parent=39 // pred_check
        %p1454 = pneg %p189
      $region50: #{attention_layer.3} parent=39 // pred_check_branch
        %1456 = sbr.rel (%p1454) target = $region52
      $region51: #{attention_layer.3} parent=39 // pred_region
        %s1457 = smul.u32 2, %s23
      $region52: #{attention_layer.3} parent=39 // pred_fallthru
        _
    $region40: #{attention_layer.3} parent=5 // pred_fallthru
      _
    %p1458 = scmp.le.s32.totalorder 2, %s12
    // Predicated region
    $region53: #{attention_layer.3} parent=5 // pred_check
      %p1459 = pneg %p1458
    $region54: #{attention_layer.3} parent=5 // pred_check_branch
      %1461 = sbr.rel (%p1459) target = $region56
    $region55: #{attention_layer.3} parent=5 // pred_region
      %s1462 = ssub.s32 %s12, 2
      // Predicated region
      $region57: #{attention_layer.3} parent=55 // pred_check
        %p1463 = pneg %p195
      $region58: #{attention_layer.3} parent=55 // pred_check_branch
        %1465 = sbr.rel (%p1463) target = $region60
      $region59: #{attention_layer.3} parent=55 // pred_region
        %s1466 = smul.u32 2, %s26
        %p1467 = scmp.lt.s32.totalorder %s25, 1
        %s1468 = scalar_select %p1467, %s25, 1
        %p1469 = scmp.lt.s32.totalorder %s1466, 1
        %s1470 = scalar_select %p1469, %s1466, 1
        %s1471 = smul.addr %s1468, 16
        %s1472 = sadd.s32 %s1470, %s1471
        %s1473 = smul.addr %s1472, 8
        %s1474 = scalar_lea.vmem %s5, %s1473
      $region60: #{attention_layer.3} parent=55 // pred_fallthru
        _
    $region56: #{attention_layer.3} parent=5 // pred_fallthru
      _
  $region6: #{attention_layer.3} parent=0 // loop_footer
    %s16 = sadd.s32 1, %s12
  $region7: #{attention_layer.3} parent=0 // loop_footer_branch
    %11 = sbr.rel target = $region3
  $region8: #{attention_layer.3} parent=0 // loop_exit
    _

</llo_original>
